<compile_context>
chip_gen: v5e
topology: v5e:2x2
jax: 0.10.0
libtpu: 0.0.40
codegen_flags: <defaults>
</compile_context>

<pallas_src>
import jax
import jax.numpy as jnp
import numpy as np
from jax import lax
from jax.experimental import pallas as pl
from jax.experimental.pallas import tpu as pltpu

IMG_C = 3
WIDTH = 16
DW = 2 * WIDTH     # DW_Expand * c = 32
FFN = 2 * WIDTH    # FFN_Expand * c = 32
PAD_C = 8          # input channels padded 3 -> 8 for sublane alignment

KP_ORDER = [
    "w_intro", "b_intro",
    "ln1_g", "ln1_b",
    "w1", "b1",
    "wdw", "bdw",
    "wsca", "bsca",
    "w3", "b3",          # beta folded in
    "ln2_g", "ln2_b",
    "w4a", "b4a", "w4b", "b4b",
    "w5", "b5",          # gamma folded in
    "w_end", "b_end",
]


# ---------------- in-kernel helpers (channels-first, flat spatial) -----------

def _shift_flat(x, dy, dx, W, masks):
    """out[:, y*W+x] = x[:, (y+dy)*W+(x+dx)] if in bounds else 0.

    x: (C, H*W); masks: (9, H*W) f32 {0,1} with tap index (dy+1)*3+(dx+1).
    The shift is a lane rotation (XLU) of the flattened spatial axis plus a
    border mask that zeroes the wrapped-around positions.
    """
    if dy == 0 and dx == 0:
        return x
    hw = x.shape[-1]
    s = dy * W + dx
    rolled = pltpu.roll(x, shift=(-s) % hw, axis=1)
    tap = (dy + 1) * 3 + (dx + 1)
    return rolled * masks[tap:tap + 1, :]


def _conv3x3_im2col(x, w_flat, b, W, masks):
    """3x3 "same" conv as a single im2col matmul.

    x: (Cin, HW), w_flat: (Cout, 9*Cin) with flat index tap*Cin + cin,
    b: (Cout, 1).  Returns (Cout, HW) in f32.
    """
    patches = jnp.concatenate(
        [_shift_flat(x, dy, dx, W, masks)
         for dy in (-1, 0, 1) for dx in (-1, 0, 1)],
        axis=0)                                              # (9*Cin, HW)
    return jnp.dot(w_flat, patches, preferred_element_type=jnp.float32) + b


def _dwconv3x3_cf(x, w_taps, b, W, masks):
    """Depthwise 3x3 "same" conv: x (C, HW), w_taps (C, 9), b (C, 1)."""
    acc = jnp.zeros(x.shape, jnp.float32)
    tap = 0
    for dy in (-1, 0, 1):
        for dx in (-1, 0, 1):
            acc = acc + _shift_flat(x, dy, dx, W, masks) * w_taps[:, tap:tap + 1]
            tap += 1
    return acc + b


def _layernorm_cf(x, g, b, eps=1e-6):
    """Per-pixel LayerNorm over channels; x (C, HW), g/b (C, 1)."""
    mu = jnp.mean(x, axis=0, keepdims=True)
    var = jnp.mean((x - mu) ** 2, axis=0, keepdims=True)
    return g * ((x - mu) / jnp.sqrt(var + eps)) + b


# --------------------------------- kernel ------------------------------------

def _make_kernel(H, W):
    def kernel(x_ref, masks_ref,
               w_intro_ref, b_intro_ref,
               ln1_g_ref, ln1_b_ref,
               w1_ref, b1_ref,
               wdw_ref, bdw_ref,
               wsca_ref, bsca_ref,
               w3_ref, b3_ref,
               ln2_g_ref, ln2_b_ref,
               w4a_ref, b4a_ref, w4b_ref, b4b_ref,
               w5_ref, b5_ref,
               w_end_ref, b_end_ref,
               o_ref):
        masks = masks_ref[...]                       # (9, HW) f32 {0,1}
        x8 = x_ref[0]                                # (8, HW); rows 3..7 zero

        # intro conv 3x3 (3 -> 16): one im2col matmul, K = 9*8 = 72
        f = _conv3x3_im2col(x8, w_intro_ref[...], b_intro_ref[...], W, masks)

        # ----------------------------- NAFBlock(16) --------------------------
        inp = f
        t = _layernorm_cf(inp, ln1_g_ref[...], ln1_b_ref[...])
        t = jnp.dot(w1_ref[...], t,
                    preferred_element_type=jnp.float32) + b1_ref[...]   # (32, HW)
        t = _dwconv3x3_cf(t, wdw_ref[...], bdw_ref[...], W, masks)      # (32, HW)
        t = t[:WIDTH, :] * t[WIDTH:, :]              # SimpleGate (aligned split)

        # Simplified Channel Attention: global average pool + 1x1, then scale.
        pooled = jnp.mean(t, axis=1, keepdims=True)                     # (16, 1)
        sca = jnp.dot(wsca_ref[...], pooled,
                      preferred_element_type=jnp.float32) + bsca_ref[...]
        t = t * sca

        t = jnp.dot(w3_ref[...], t,
                    preferred_element_type=jnp.float32) + b3_ref[...]   # (16, HW)
        y = inp + t                                  # beta folded into w3/b3

        t = _layernorm_cf(y, ln2_g_ref[...], ln2_b_ref[...])
        ta = jnp.dot(w4a_ref[...], t,
                     preferred_element_type=jnp.float32) + b4a_ref[...]
        tb = jnp.dot(w4b_ref[...], t,
                     preferred_element_type=jnp.float32) + b4b_ref[...]
        t = ta * tb                                  # SimpleGate via split w4
        t = jnp.dot(w5_ref[...], t,
                    preferred_element_type=jnp.float32) + b5_ref[...]   # (16, HW)
        blk = y + t                                  # gamma folded into w5/b5
        # ----------------------------------------------------------------------

        # ending conv 3x3 (16 -> 3): one im2col matmul (K = 144) + residual
        feat = _conv3x3_im2col(blk, w_end_ref[...], b_end_ref[...], W, masks)
        o_ref[0] = feat + x8[:IMG_C, :]

    return kernel


# --------------------------------- wrapper -----------------------------------

def _make_border_masks(H, W):
    ys = jnp.arange(H)[:, None]
    xs = jnp.arange(W)[None, :]
    rows = []
    for dy in (-1, 0, 1):
        for dx in (-1, 0, 1):
            m = ((ys + dy >= 0) & (ys + dy < H) &
                 (xs + dx >= 0) & (xs + dx < W))
            rows.append(m.reshape(H * W))
    return jnp.stack(rows, axis=0).astype(jnp.float32)       # (9, H*W)


def _prepare_kernel_params(p):
    """Transpose / flatten / fold the PyTorch-layout params for the kernel."""
    beta = p["beta"]
    gamma = p["gamma"]
    kp = {}

    # intro: HWIO (3,3,3,16) -> pad Cin 3->8 -> (Cout=16, 9*8)
    w_intro_pad = jnp.zeros((3, 3, PAD_C, WIDTH), jnp.float32)
    w_intro_pad = w_intro_pad.at[:, :, :IMG_C, :].set(p["w_intro"])
    kp["w_intro"] = jnp.transpose(w_intro_pad, (3, 0, 1, 2)).reshape(WIDTH, 9 * PAD_C)
    kp["b_intro"] = p["b_intro"][:, None]

    kp["ln1_g"] = p["ln1_g"][:, None]
    kp["ln1_b"] = p["ln1_b"][:, None]

    kp["w1"] = p["w1"].T                                     # (32, 16)
    kp["b1"] = p["b1"][:, None]

    kp["wdw"] = jnp.transpose(p["wdw"], (2, 0, 1)).reshape(DW, 9)   # (32, 9)
    kp["bdw"] = p["bdw"][:, None]

    kp["wsca"] = p["wsca"].T                                 # (16, 16)
    kp["bsca"] = p["bsca"][:, None]

    # fold beta into conv3
    kp["w3"] = (p["w3"] * beta[None, :]).T                   # (16, 16)
    kp["b3"] = (p["b3"] * beta)[:, None]

    kp["ln2_g"] = p["ln2_g"][:, None]
    kp["ln2_b"] = p["ln2_b"][:, None]

    # split conv4 into the two SimpleGate halves
    kp["w4a"] = p["w4"][:, :WIDTH].T                         # (16, 16)
    kp["b4a"] = p["b4"][:WIDTH][:, None]
    kp["w4b"] = p["w4"][:, WIDTH:].T                         # (16, 16)
    kp["b4b"] = p["b4"][WIDTH:][:, None]

    # fold gamma into conv5
    kp["w5"] = (p["w5"] * gamma[None, :]).T                  # (16, 16)
    kp["b5"] = (p["b5"] * gamma)[:, None]

    # ending: HWIO (3,3,16,3) -> (Cout=3, 9*16)
    kp["w_end"] = jnp.transpose(p["w_end"], (3, 0, 1, 2)).reshape(IMG_C, 9 * WIDTH)
    kp["b_end"] = p["b_end"][:, None]
    return kp


def naf_net_forward(x_nchw, params):
    # x_nchw: (B, 3, H, W) float32, PyTorch NCHW convention.
    x = x_nchw.astype(jnp.float32)
    B, C, H, W = x.shape
    assert C == IMG_C
    HW = H * W

    # channels-first, flattened spatial, channels padded 3 -> 8
    x_flat = x.reshape(B, C, HW)
    x_pad = jnp.pad(x_flat, ((0, 0), (0, PAD_C - C), (0, 0)))        # (B, 8, HW)

    masks = _make_border_masks(H, W)                                 # (9, HW)
    kp = _prepare_kernel_params(params)
    plist = [kp[name] for name in KP_ORDER]

    def const_spec(arr):
        nd = arr.ndim
        return pl.BlockSpec(arr.shape, lambda b, nd=nd: (0,) * nd)

    in_specs = [pl.BlockSpec((1, PAD_C, HW), lambda b: (b, 0, 0)),
                const_spec(masks)]
    in_specs += [const_spec(p) for p in plist]

    out = pl.pallas_call(
        _make_kernel(H, W),
        out_shape=jax.ShapeDtypeStruct((B, IMG_C, HW), jnp.float32),
        grid_spec=pltpu.PrefetchScalarGridSpec(
            num_scalar_prefetch=0,
            grid=(B,),
            in_specs=in_specs,
            out_specs=pl.BlockSpec((1, IMG_C, HW), lambda b: (b, 0, 0)),
        ),
        compiler_params=pltpu.CompilerParams(
            dimension_semantics=("parallel",),
        ),
    )(x_pad, masks, *plist)
    return out.reshape(B, IMG_C, H, W)


# --------------------------- deterministic params ----------------------------

def init_params(key):
    ks = jax.random.split(key, 18)

    def rn(k, shape, scale=0.1):
        return scale * jax.random.normal(k, shape, jnp.float32)

    p = {}
    p["w_intro"] = rn(ks[0], (3, 3, IMG_C, WIDTH))
    p["b_intro"] = rn(ks[1], (WIDTH,))
    p["ln1_g"] = jnp.ones((WIDTH,), jnp.float32)
    p["ln1_b"] = jnp.zeros((WIDTH,), jnp.float32)
    p["w1"] = rn(ks[2], (WIDTH, DW))
    p["b1"] = rn(ks[3], (DW,))
    p["wdw"] = rn(ks[4], (3, 3, DW))
    p["bdw"] = rn(ks[5], (DW,))
    p["wsca"] = rn(ks[6], (DW // 2, DW // 2))
    p["bsca"] = rn(ks[7], (DW // 2,))
    p["w3"] = rn(ks[8], (DW // 2, WIDTH))
    p["b3"] = rn(ks[9], (WIDTH,))
    p["ln2_g"] = jnp.ones((WIDTH,), jnp.float32)
    p["ln2_b"] = jnp.zeros((WIDTH,), jnp.float32)
    p["w4"] = rn(ks[10], (WIDTH, FFN))
    p["b4"] = rn(ks[11], (FFN,))
    p["w5"] = rn(ks[12], (FFN // 2, WIDTH))
    p["b5"] = rn(ks[13], (WIDTH,))
    # PyTorch inits beta/gamma to zeros (NAFBlock would then be identity);
    # use small random values so the synthetic test exercises the full path.
    p["beta"] = rn(ks[14], (WIDTH,))
    p["gamma"] = rn(ks[15], (WIDTH,))
    p["w_end"] = rn(ks[16], (3, 3, WIDTH, IMG_C))
    p["b_end"] = rn(ks[17], (IMG_C,))
    return p


# ----------------------------- pure-JAX reference ----------------------------

def reference(x_nchw, p):
    x = jnp.transpose(x_nchw, (0, 2, 3, 1)).astype(jnp.float32)

    def conv3x3(x, w, b):
        return lax.conv_general_dilated(
            x, w, (1, 1), "SAME",
            dimension_numbers=("NHWC", "HWIO", "NHWC")) + b

    def dwconv3x3(x, w, b):
        C = x.shape[-1]
        return lax.conv_general_dilated(
            x, w[:, :, None, :], (1, 1), "SAME",
            dimension_numbers=("NHWC", "HWIO", "NHWC"),
            feature_group_count=C) + b

    def ln(x, g, b, eps=1e-6):
        mu = x.mean(-1, keepdims=True)
        var = ((x - mu) ** 2).mean(-1, keepdims=True)
        return g * (x - mu) / jnp.sqrt(var + eps) + b

    def sg(x):
        c = x.shape[-1] // 2
        return x[..., :c] * x[..., c:]

    f = conv3x3(x, p["w_intro"], p["b_intro"])
    inp = f
    t = ln(inp, p["ln1_g"], p["ln1_b"])
    t = jnp.einsum("bhwc,cd->bhwd", t, p["w1"]) + p["b1"]
    t = dwconv3x3(t, p["wdw"], p["bdw"])
    t = sg(t)
    pooled = t.mean(axis=(1, 2))
    sca = pooled @ p["wsca"] + p["bsca"]
    t = t * sca[:, None, None, :]
    t = jnp.einsum("bhwc,cd->bhwd", t, p["w3"]) + p["b3"]
    y = inp + t * p["beta"]
    t = ln(y, p["ln2_g"], p["ln2_b"])
    t = jnp.einsum("bhwc,cd->bhwd", t, p["w4"]) + p["b4"]
    t = sg(t)
    t = jnp.einsum("bhwc,cd->bhwd", t, p["w5"]) + p["b5"]
    blk = y + t * p["gamma"]
    feat = conv3x3(blk, p["w_end"], p["b_end"])
    return jnp.transpose(feat + x, (0, 3, 1, 2))


if __name__ == "__main__":
    key = jax.random.PRNGKey(0)
    kx, kp = jax.random.split(key)
    x = jax.random.normal(kx, (2, IMG_C, 16, 16), jnp.float32)
    params = init_params(kp)

    out = naf_net_forward(x, params)
    out = jax.block_until_ready(out)
    assert out.shape == (2, 3, 16, 16)

    ref = reference(x, params)
    np.testing.assert_allclose(np.asarray(out), np.asarray(ref),
                               rtol=1e-3, atol=1e-3)
    print("KERNEL_OK")
</pallas_src>

<mosaic_0001>
module attributes {stable_mosaic.version = 11 : i64} {
  func.func @kernel(%arg0: i32, %arg1: memref<1x8x256xf32, #tpu.memory_space<vmem>>, %arg2: memref<9x256xf32, #tpu.memory_space<vmem>>, %arg3: memref<16x72xf32, #tpu.memory_space<vmem>>, %arg4: memref<16x1xf32, #tpu.memory_space<vmem>>, %arg5: memref<16x1xf32, #tpu.memory_space<vmem>>, %arg6: memref<16x1xf32, #tpu.memory_space<vmem>>, %arg7: memref<32x16xf32, #tpu.memory_space<vmem>>, %arg8: memref<32x1xf32, #tpu.memory_space<vmem>>, %arg9: memref<32x9xf32, #tpu.memory_space<vmem>>, %arg10: memref<32x1xf32, #tpu.memory_space<vmem>>, %arg11: memref<16x16xf32, #tpu.memory_space<vmem>>, %arg12: memref<16x1xf32, #tpu.memory_space<vmem>>, %arg13: memref<16x16xf32, #tpu.memory_space<vmem>>, %arg14: memref<16x1xf32, #tpu.memory_space<vmem>>, %arg15: memref<16x1xf32, #tpu.memory_space<vmem>>, %arg16: memref<16x1xf32, #tpu.memory_space<vmem>>, %arg17: memref<16x16xf32, #tpu.memory_space<vmem>>, %arg18: memref<16x1xf32, #tpu.memory_space<vmem>>, %arg19: memref<16x16xf32, #tpu.memory_space<vmem>>, %arg20: memref<16x1xf32, #tpu.memory_space<vmem>>, %arg21: memref<16x16xf32, #tpu.memory_space<vmem>>, %arg22: memref<16x1xf32, #tpu.memory_space<vmem>>, %arg23: memref<3x144xf32, #tpu.memory_space<vmem>>, %arg24: memref<3x1xf32, #tpu.memory_space<vmem>>, %arg25: memref<1x3x256xf32, #tpu.memory_space<vmem>>) attributes {dimension_semantics = [#tpu.dimension_semantics<parallel>], iteration_bounds = array<i64: 2>, scalar_prefetch = 0 : i64, scratch_operands = 0 : i64, tpu.core_type = #tpu.core_type<tc>, window_params = [{transform_indices = @transform_0, window_bounds = array<i64: 1, 8, 256>}, {pipeline_mode = #tpu.pipeline_mode<synchronous>, transform_indices = @transform_1, window_bounds = array<i64: 9, 256>}, {pipeline_mode = #tpu.pipeline_mode<synchronous>, transform_indices = @transform_2, window_bounds = array<i64: 16, 72>}, {pipeline_mode = #tpu.pipeline_mode<synchronous>, transform_indices = @transform_3, window_bounds = array<i64: 16, 1>}, {pipeline_mode = #tpu.pipeline_mode<synchronous>, transform_indices = @transform_4, window_bounds = array<i64: 16, 1>}, {pipeline_mode = #tpu.pipeline_mode<synchronous>, transform_indices = @transform_5, window_bounds = array<i64: 16, 1>}, {pipeline_mode = #tpu.pipeline_mode<synchronous>, transform_indices = @transform_6, window_bounds = array<i64: 32, 16>}, {pipeline_mode = #tpu.pipeline_mode<synchronous>, transform_indices = @transform_7, window_bounds = array<i64: 32, 1>}, {pipeline_mode = #tpu.pipeline_mode<synchronous>, transform_indices = @transform_8, window_bounds = array<i64: 32, 9>}, {pipeline_mode = #tpu.pipeline_mode<synchronous>, transform_indices = @transform_9, window_bounds = array<i64: 32, 1>}, {pipeline_mode = #tpu.pipeline_mode<synchronous>, transform_indices = @transform_10, window_bounds = array<i64: 16, 16>}, {pipeline_mode = #tpu.pipeline_mode<synchronous>, transform_indices = @transform_11, window_bounds = array<i64: 16, 1>}, {pipeline_mode = #tpu.pipeline_mode<synchronous>, transform_indices = @transform_12, window_bounds = array<i64: 16, 16>}, {pipeline_mode = #tpu.pipeline_mode<synchronous>, transform_indices = @transform_13, window_bounds = array<i64: 16, 1>}, {pipeline_mode = #tpu.pipeline_mode<synchronous>, transform_indices = @transform_14, window_bounds = array<i64: 16, 1>}, {pipeline_mode = #tpu.pipeline_mode<synchronous>, transform_indices = @transform_15, window_bounds = array<i64: 16, 1>}, {pipeline_mode = #tpu.pipeline_mode<synchronous>, transform_indices = @transform_16, window_bounds = array<i64: 16, 16>}, {pipeline_mode = #tpu.pipeline_mode<synchronous>, transform_indices = @transform_17, window_bounds = array<i64: 16, 1>}, {pipeline_mode = #tpu.pipeline_mode<synchronous>, transform_indices = @transform_18, window_bounds = array<i64: 16, 16>}, {pipeline_mode = #tpu.pipeline_mode<synchronous>, transform_indices = @transform_19, window_bounds = array<i64: 16, 1>}, {pipeline_mode = #tpu.pipeline_mode<synchronous>, transform_indices = @transform_20, window_bounds = array<i64: 16, 16>}, {pipeline_mode = #tpu.pipeline_mode<synchronous>, transform_indices = @transform_21, window_bounds = array<i64: 16, 1>}, {pipeline_mode = #tpu.pipeline_mode<synchronous>, transform_indices = @transform_22, window_bounds = array<i64: 3, 144>}, {pipeline_mode = #tpu.pipeline_mode<synchronous>, transform_indices = @transform_23, window_bounds = array<i64: 3, 1>}, {transform_indices = @transform_24, window_bounds = array<i64: 1, 3, 256>}]} {
    %c0 = arith.constant 0 : index
    %c0_0 = arith.constant 0 : index
    %0 = vector.load %arg2[%c0, %c0_0] : memref<9x256xf32, #tpu.memory_space<vmem>>, vector<9x256xf32>
    %c0_1 = arith.constant 0 : index
    %c0_2 = arith.constant 0 : index
    %c0_3 = arith.constant 0 : index
    %1 = vector.load %arg1[%c0_1, %c0_2, %c0_3] : memref<1x8x256xf32, #tpu.memory_space<vmem>>, vector<1x8x256xf32>
    %2 = vector.shape_cast %1 : vector<1x8x256xf32> to vector<8x256xf32>
    %c0_4 = arith.constant 0 : index
    %c0_5 = arith.constant 0 : index
    %3 = vector.load %arg3[%c0_4, %c0_5] : memref<16x72xf32, #tpu.memory_space<vmem>>, vector<16x72xf32>
    %c0_6 = arith.constant 0 : index
    %c0_7 = arith.constant 0 : index
    %4 = vector.load %arg4[%c0_6, %c0_7] : memref<16x1xf32, #tpu.memory_space<vmem>>, vector<16x1xf32>
    %c17_i32 = arith.constant 17 : i32
    %5 = tpu.dynamic_rotate %2 by %c17_i32 dim 1 : vector<8x256xf32>, i32 -> vector<8x256xf32>
    %6 = vector.extract_strided_slice %0 {offsets = [0, 0], sizes = [1, 256], strides = [1, 1]} : vector<9x256xf32> to vector<1x256xf32>
    %7 = vector.broadcast %6 : vector<1x256xf32> to vector<8x256xf32>
    %8 = arith.mulf %5, %7 : vector<8x256xf32>
    %c16_i32 = arith.constant 16 : i32
    %9 = tpu.dynamic_rotate %2 by %c16_i32 dim 1 : vector<8x256xf32>, i32 -> vector<8x256xf32>
    %10 = vector.extract_strided_slice %0 {offsets = [1, 0], sizes = [1, 256], strides = [1, 1]} : vector<9x256xf32> to vector<1x256xf32>
    %11 = vector.broadcast %10 : vector<1x256xf32> to vector<8x256xf32>
    %12 = arith.mulf %9, %11 : vector<8x256xf32>
    %c15_i32 = arith.constant 15 : i32
    %13 = tpu.dynamic_rotate %2 by %c15_i32 dim 1 : vector<8x256xf32>, i32 -> vector<8x256xf32>
    %14 = vector.extract_strided_slice %0 {offsets = [2, 0], sizes = [1, 256], strides = [1, 1]} : vector<9x256xf32> to vector<1x256xf32>
    %15 = vector.broadcast %14 : vector<1x256xf32> to vector<8x256xf32>
    %16 = arith.mulf %13, %15 : vector<8x256xf32>
    %c1_i32 = arith.constant 1 : i32
    %17 = tpu.dynamic_rotate %2 by %c1_i32 dim 1 : vector<8x256xf32>, i32 -> vector<8x256xf32>
    %18 = vector.extract_strided_slice %0 {offsets = [3, 0], sizes = [1, 256], strides = [1, 1]} : vector<9x256xf32> to vector<1x256xf32>
    %19 = vector.broadcast %18 : vector<1x256xf32> to vector<8x256xf32>
    %20 = arith.mulf %17, %19 : vector<8x256xf32>
    %c255_i32 = arith.constant 255 : i32
    %21 = tpu.dynamic_rotate %2 by %c255_i32 dim 1 : vector<8x256xf32>, i32 -> vector<8x256xf32>
    %22 = vector.extract_strided_slice %0 {offsets = [5, 0], sizes = [1, 256], strides = [1, 1]} : vector<9x256xf32> to vector<1x256xf32>
    %23 = vector.broadcast %22 : vector<1x256xf32> to vector<8x256xf32>
    %24 = arith.mulf %21, %23 : vector<8x256xf32>
    %c241_i32 = arith.constant 241 : i32
    %25 = tpu.dynamic_rotate %2 by %c241_i32 dim 1 : vector<8x256xf32>, i32 -> vector<8x256xf32>
    %26 = vector.extract_strided_slice %0 {offsets = [6, 0], sizes = [1, 256], strides = [1, 1]} : vector<9x256xf32> to vector<1x256xf32>
    %27 = vector.broadcast %26 : vector<1x256xf32> to vector<8x256xf32>
    %28 = arith.mulf %25, %27 : vector<8x256xf32>
    %c240_i32 = arith.constant 240 : i32
    %29 = tpu.dynamic_rotate %2 by %c240_i32 dim 1 : vector<8x256xf32>, i32 -> vector<8x256xf32>
    %30 = vector.extract_strided_slice %0 {offsets = [7, 0], sizes = [1, 256], strides = [1, 1]} : vector<9x256xf32> to vector<1x256xf32>
    %31 = vector.broadcast %30 : vector<1x256xf32> to vector<8x256xf32>
    %32 = arith.mulf %29, %31 : vector<8x256xf32>
    %c239_i32 = arith.constant 239 : i32
    %33 = tpu.dynamic_rotate %2 by %c239_i32 dim 1 : vector<8x256xf32>, i32 -> vector<8x256xf32>
    %34 = vector.extract_strided_slice %0 {offsets = [8, 0], sizes = [1, 256], strides = [1, 1]} : vector<9x256xf32> to vector<1x256xf32>
    %35 = vector.broadcast %34 : vector<1x256xf32> to vector<8x256xf32>
    %36 = arith.mulf %33, %35 : vector<8x256xf32>
    %37 = tpu.concatenate %8, %12, %16, %20, %2, %24, %28, %32, %36 in 0 : vector<8x256xf32>, vector<8x256xf32>, vector<8x256xf32>, vector<8x256xf32>, vector<8x256xf32>, vector<8x256xf32>, vector<8x256xf32>, vector<8x256xf32>, vector<8x256xf32> -> vector<72x256xf32>
    %cst = arith.constant dense<0.000000e+00> : vector<16x256xf32>
    %38 = tpu.matmul %3, %37, %cst {dimension_numbers = #tpu.dot_dimension_numbers<[1], [0], [0], [1], [0, 0, 1, 1], [], []>} : vector<16x72xf32>, vector<72x256xf32>, vector<16x256xf32> -> vector<16x256xf32>
    %39 = vector.broadcast %4 : vector<16x1xf32> to vector<16x256xf32>
    %40 = arith.addf %38, %39 : vector<16x256xf32>
    %c0_8 = arith.constant 0 : index
    %c0_9 = arith.constant 0 : index
    %41 = vector.load %arg5[%c0_8, %c0_9] : memref<16x1xf32, #tpu.memory_space<vmem>>, vector<16x1xf32>
    %c0_10 = arith.constant 0 : index
    %c0_11 = arith.constant 0 : index
    %42 = vector.load %arg6[%c0_10, %c0_11] : memref<16x1xf32, #tpu.memory_space<vmem>>, vector<16x1xf32>
    %cst_12 = arith.constant dense<0.000000e+00> : vector<256xf32>
    %43 = vector.multi_reduction <add>, %40, %cst_12 [0] : vector<16x256xf32> to vector<256xf32>
    %44 = vector.shape_cast %43 : vector<256xf32> to vector<1x256xf32>
    %cst_13 = arith.constant 1.600000e+01 : f32
    %45 = vector.broadcast %cst_13 : f32 to vector<1x256xf32>
    %46 = arith.divf %44, %45 : vector<1x256xf32>
    %47 = vector.broadcast %46 : vector<1x256xf32> to vector<16x256xf32>
    %48 = arith.subf %40, %47 : vector<16x256xf32>
    %49 = arith.mulf %48, %48 : vector<16x256xf32>
    %cst_14 = arith.constant dense<0.000000e+00> : vector<256xf32>
    %50 = vector.multi_reduction <add>, %49, %cst_14 [0] : vector<16x256xf32> to vector<256xf32>
    %51 = vector.shape_cast %50 : vector<256xf32> to vector<1x256xf32>
    %cst_15 = arith.constant 1.600000e+01 : f32
    %52 = vector.broadcast %cst_15 : f32 to vector<1x256xf32>
    %53 = arith.divf %51, %52 : vector<1x256xf32>
    %54 = vector.broadcast %46 : vector<1x256xf32> to vector<16x256xf32>
    %55 = arith.subf %40, %54 : vector<16x256xf32>
    %cst_16 = arith.constant 9.99999997E-7 : f32
    %56 = vector.broadcast %cst_16 : f32 to vector<1x256xf32>
    %57 = arith.addf %53, %56 : vector<1x256xf32>
    %58 = math.sqrt %57 : vector<1x256xf32>
    %59 = vector.broadcast %58 : vector<1x256xf32> to vector<16x256xf32>
    %60 = arith.divf %55, %59 : vector<16x256xf32>
    %61 = vector.broadcast %41 : vector<16x1xf32> to vector<16x256xf32>
    %62 = arith.mulf %61, %60 : vector<16x256xf32>
    %63 = vector.broadcast %42 : vector<16x1xf32> to vector<16x256xf32>
    %64 = arith.addf %62, %63 : vector<16x256xf32>
    %c0_17 = arith.constant 0 : index
    %c0_18 = arith.constant 0 : index
    %65 = vector.load %arg7[%c0_17, %c0_18] : memref<32x16xf32, #tpu.memory_space<vmem>>, vector<32x16xf32>
    %cst_19 = arith.constant dense<0.000000e+00> : vector<32x256xf32>
    %66 = tpu.matmul %65, %64, %cst_19 {dimension_numbers = #tpu.dot_dimension_numbers<[1], [0], [0], [1], [0, 0, 1, 1], [], []>} : vector<32x16xf32>, vector<16x256xf32>, vector<32x256xf32> -> vector<32x256xf32>
    %c0_20 = arith.constant 0 : index
    %c0_21 = arith.constant 0 : index
    %67 = vector.load %arg8[%c0_20, %c0_21] : memref<32x1xf32, #tpu.memory_space<vmem>>, vector<32x1xf32>
    %68 = vector.broadcast %67 : vector<32x1xf32> to vector<32x256xf32>
    %69 = arith.addf %66, %68 : vector<32x256xf32>
    %c0_22 = arith.constant 0 : index
    %c0_23 = arith.constant 0 : index
    %70 = vector.load %arg9[%c0_22, %c0_23] : memref<32x9xf32, #tpu.memory_space<vmem>>, vector<32x9xf32>
    %c0_24 = arith.constant 0 : index
    %c0_25 = arith.constant 0 : index
    %71 = vector.load %arg10[%c0_24, %c0_25] : memref<32x1xf32, #tpu.memory_space<vmem>>, vector<32x1xf32>
    %cst_26 = arith.constant 0.000000e+00 : f32
    %72 = vector.broadcast %cst_26 : f32 to vector<32x256xf32>
    %c17_i32_27 = arith.constant 17 : i32
    %73 = tpu.dynamic_rotate %69 by %c17_i32_27 dim 1 : vector<32x256xf32>, i32 -> vector<32x256xf32>
    %74 = vector.extract_strided_slice %0 {offsets = [0, 0], sizes = [1, 256], strides = [1, 1]} : vector<9x256xf32> to vector<1x256xf32>
    %75 = vector.broadcast %74 : vector<1x256xf32> to vector<32x256xf32>
    %76 = arith.mulf %73, %75 : vector<32x256xf32>
    %77 = vector.extract_strided_slice %70 {offsets = [0, 0], sizes = [32, 1], strides = [1, 1]} : vector<32x9xf32> to vector<32x1xf32>
    %78 = vector.broadcast %77 : vector<32x1xf32> to vector<32x256xf32>
    %79 = arith.mulf %76, %78 : vector<32x256xf32>
    %80 = arith.addf %72, %79 : vector<32x256xf32>
    %c16_i32_28 = arith.constant 16 : i32
    %81 = tpu.dynamic_rotate %69 by %c16_i32_28 dim 1 : vector<32x256xf32>, i32 -> vector<32x256xf32>
    %82 = vector.extract_strided_slice %0 {offsets = [1, 0], sizes = [1, 256], strides = [1, 1]} : vector<9x256xf32> to vector<1x256xf32>
    %83 = vector.broadcast %82 : vector<1x256xf32> to vector<32x256xf32>
    %84 = arith.mulf %81, %83 : vector<32x256xf32>
    %85 = vector.extract_strided_slice %70 {offsets = [0, 1], sizes = [32, 1], strides = [1, 1]} : vector<32x9xf32> to vector<32x1xf32>
    %86 = vector.broadcast %85 : vector<32x1xf32> to vector<32x256xf32>
    %87 = arith.mulf %84, %86 : vector<32x256xf32>
    %88 = arith.addf %80, %87 : vector<32x256xf32>
    %c15_i32_29 = arith.constant 15 : i32
    %89 = tpu.dynamic_rotate %69 by %c15_i32_29 dim 1 : vector<32x256xf32>, i32 -> vector<32x256xf32>
    %90 = vector.extract_strided_slice %0 {offsets = [2, 0], sizes = [1, 256], strides = [1, 1]} : vector<9x256xf32> to vector<1x256xf32>
    %91 = vector.broadcast %90 : vector<1x256xf32> to vector<32x256xf32>
    %92 = arith.mulf %89, %91 : vector<32x256xf32>
    %93 = vector.extract_strided_slice %70 {offsets = [0, 2], sizes = [32, 1], strides = [1, 1]} : vector<32x9xf32> to vector<32x1xf32>
    %94 = vector.broadcast %93 : vector<32x1xf32> to vector<32x256xf32>
    %95 = arith.mulf %92, %94 : vector<32x256xf32>
    %96 = arith.addf %88, %95 : vector<32x256xf32>
    %c1_i32_30 = arith.constant 1 : i32
    %97 = tpu.dynamic_rotate %69 by %c1_i32_30 dim 1 : vector<32x256xf32>, i32 -> vector<32x256xf32>
    %98 = vector.extract_strided_slice %0 {offsets = [3, 0], sizes = [1, 256], strides = [1, 1]} : vector<9x256xf32> to vector<1x256xf32>
    %99 = vector.broadcast %98 : vector<1x256xf32> to vector<32x256xf32>
    %100 = arith.mulf %97, %99 : vector<32x256xf32>
    %101 = vector.extract_strided_slice %70 {offsets = [0, 3], sizes = [32, 1], strides = [1, 1]} : vector<32x9xf32> to vector<32x1xf32>
    %102 = vector.broadcast %101 : vector<32x1xf32> to vector<32x256xf32>
    %103 = arith.mulf %100, %102 : vector<32x256xf32>
    %104 = arith.addf %96, %103 : vector<32x256xf32>
    %105 = vector.extract_strided_slice %70 {offsets = [0, 4], sizes = [32, 1], strides = [1, 1]} : vector<32x9xf32> to vector<32x1xf32>
    %106 = vector.broadcast %105 : vector<32x1xf32> to vector<32x256xf32>
    %107 = arith.mulf %69, %106 : vector<32x256xf32>
    %108 = arith.addf %104, %107 : vector<32x256xf32>
    %c255_i32_31 = arith.constant 255 : i32
    %109 = tpu.dynamic_rotate %69 by %c255_i32_31 dim 1 : vector<32x256xf32>, i32 -> vector<32x256xf32>
    %110 = vector.extract_strided_slice %0 {offsets = [5, 0], sizes = [1, 256], strides = [1, 1]} : vector<9x256xf32> to vector<1x256xf32>
    %111 = vector.broadcast %110 : vector<1x256xf32> to vector<32x256xf32>
    %112 = arith.mulf %109, %111 : vector<32x256xf32>
    %113 = vector.extract_strided_slice %70 {offsets = [0, 5], sizes = [32, 1], strides = [1, 1]} : vector<32x9xf32> to vector<32x1xf32>
    %114 = vector.broadcast %113 : vector<32x1xf32> to vector<32x256xf32>
    %115 = arith.mulf %112, %114 : vector<32x256xf32>
    %116 = arith.addf %108, %115 : vector<32x256xf32>
    %c241_i32_32 = arith.constant 241 : i32
    %117 = tpu.dynamic_rotate %69 by %c241_i32_32 dim 1 : vector<32x256xf32>, i32 -> vector<32x256xf32>
    %118 = vector.extract_strided_slice %0 {offsets = [6, 0], sizes = [1, 256], strides = [1, 1]} : vector<9x256xf32> to vector<1x256xf32>
    %119 = vector.broadcast %118 : vector<1x256xf32> to vector<32x256xf32>
    %120 = arith.mulf %117, %119 : vector<32x256xf32>
    %121 = vector.extract_strided_slice %70 {offsets = [0, 6], sizes = [32, 1], strides = [1, 1]} : vector<32x9xf32> to vector<32x1xf32>
    %122 = vector.broadcast %121 : vector<32x1xf32> to vector<32x256xf32>
    %123 = arith.mulf %120, %122 : vector<32x256xf32>
    %124 = arith.addf %116, %123 : vector<32x256xf32>
    %c240_i32_33 = arith.constant 240 : i32
    %125 = tpu.dynamic_rotate %69 by %c240_i32_33 dim 1 : vector<32x256xf32>, i32 -> vector<32x256xf32>
    %126 = vector.extract_strided_slice %0 {offsets = [7, 0], sizes = [1, 256], strides = [1, 1]} : vector<9x256xf32> to vector<1x256xf32>
    %127 = vector.broadcast %126 : vector<1x256xf32> to vector<32x256xf32>
    %128 = arith.mulf %125, %127 : vector<32x256xf32>
    %129 = vector.extract_strided_slice %70 {offsets = [0, 7], sizes = [32, 1], strides = [1, 1]} : vector<32x9xf32> to vector<32x1xf32>
    %130 = vector.broadcast %129 : vector<32x1xf32> to vector<32x256xf32>
    %131 = arith.mulf %128, %130 : vector<32x256xf32>
    %132 = arith.addf %124, %131 : vector<32x256xf32>
    %c239_i32_34 = arith.constant 239 : i32
    %133 = tpu.dynamic_rotate %69 by %c239_i32_34 dim 1 : vector<32x256xf32>, i32 -> vector<32x256xf32>
    %134 = vector.extract_strided_slice %0 {offsets = [8, 0], sizes = [1, 256], strides = [1, 1]} : vector<9x256xf32> to vector<1x256xf32>
    %135 = vector.broadcast %134 : vector<1x256xf32> to vector<32x256xf32>
    %136 = arith.mulf %133, %135 : vector<32x256xf32>
    %137 = vector.extract_strided_slice %70 {offsets = [0, 8], sizes = [32, 1], strides = [1, 1]} : vector<32x9xf32> to vector<32x1xf32>
    %138 = vector.broadcast %137 : vector<32x1xf32> to vector<32x256xf32>
    %139 = arith.mulf %136, %138 : vector<32x256xf32>
    %140 = arith.addf %132, %139 : vector<32x256xf32>
    %141 = vector.broadcast %71 : vector<32x1xf32> to vector<32x256xf32>
    %142 = arith.addf %140, %141 : vector<32x256xf32>
    %143 = vector.extract_strided_slice %142 {offsets = [0, 0], sizes = [16, 256], strides = [1, 1]} : vector<32x256xf32> to vector<16x256xf32>
    %144 = vector.extract_strided_slice %142 {offsets = [16, 0], sizes = [16, 256], strides = [1, 1]} : vector<32x256xf32> to vector<16x256xf32>
    %145 = arith.mulf %143, %144 : vector<16x256xf32>
    %cst_35 = arith.constant dense<0.000000e+00> : vector<16xf32>
    %146 = vector.multi_reduction <add>, %145, %cst_35 [1] : vector<16x256xf32> to vector<16xf32>
    %147 = vector.shape_cast %146 : vector<16xf32> to vector<16x1xf32>
    %cst_36 = arith.constant 2.560000e+02 : f32
    %148 = vector.broadcast %cst_36 : f32 to vector<16x1xf32>
    %149 = arith.divf %147, %148 : vector<16x1xf32>
    %c0_37 = arith.constant 0 : index
    %c0_38 = arith.constant 0 : index
    %150 = vector.load %arg11[%c0_37, %c0_38] : memref<16x16xf32, #tpu.memory_space<vmem>>, vector<16x16xf32>
    %cst_39 = arith.constant dense<0.000000e+00> : vector<16x1xf32>
    %151 = tpu.matmul %150, %149, %cst_39 {dimension_numbers = #tpu.dot_dimension_numbers<[1], [0], [0], [1], [0, 0, 1, 1], [], []>} : vector<16x16xf32>, vector<16x1xf32>, vector<16x1xf32> -> vector<16x1xf32>
    %c0_40 = arith.constant 0 : index
    %c0_41 = arith.constant 0 : index
    %152 = vector.load %arg12[%c0_40, %c0_41] : memref<16x1xf32, #tpu.memory_space<vmem>>, vector<16x1xf32>
    %153 = arith.addf %151, %152 : vector<16x1xf32>
    %154 = vector.broadcast %153 : vector<16x1xf32> to vector<16x256xf32>
    %155 = arith.mulf %145, %154 : vector<16x256xf32>
    %c0_42 = arith.constant 0 : index
    %c0_43 = arith.constant 0 : index
    %156 = vector.load %arg13[%c0_42, %c0_43] : memref<16x16xf32, #tpu.memory_space<vmem>>, vector<16x16xf32>
    %cst_44 = arith.constant dense<0.000000e+00> : vector<16x256xf32>
    %157 = tpu.matmul %156, %155, %cst_44 {dimension_numbers = #tpu.dot_dimension_numbers<[1], [0], [0], [1], [0, 0, 1, 1], [], []>} : vector<16x16xf32>, vector<16x256xf32>, vector<16x256xf32> -> vector<16x256xf32>
    %c0_45 = arith.constant 0 : index
    %c0_46 = arith.constant 0 : index
    %158 = vector.load %arg14[%c0_45, %c0_46] : memref<16x1xf32, #tpu.memory_space<vmem>>, vector<16x1xf32>
    %159 = vector.broadcast %158 : vector<16x1xf32> to vector<16x256xf32>
    %160 = arith.addf %157, %159 : vector<16x256xf32>
    %161 = arith.addf %40, %160 : vector<16x256xf32>
    %c0_47 = arith.constant 0 : index
    %c0_48 = arith.constant 0 : index
    %162 = vector.load %arg15[%c0_47, %c0_48] : memref<16x1xf32, #tpu.memory_space<vmem>>, vector<16x1xf32>
    %c0_49 = arith.constant 0 : index
    %c0_50 = arith.constant 0 : index
    %163 = vector.load %arg16[%c0_49, %c0_50] : memref<16x1xf32, #tpu.memory_space<vmem>>, vector<16x1xf32>
    %cst_51 = arith.constant dense<0.000000e+00> : vector<256xf32>
    %164 = vector.multi_reduction <add>, %161, %cst_51 [0] : vector<16x256xf32> to vector<256xf32>
    %165 = vector.shape_cast %164 : vector<256xf32> to vector<1x256xf32>
    %cst_52 = arith.constant 1.600000e+01 : f32
    %166 = vector.broadcast %cst_52 : f32 to vector<1x256xf32>
    %167 = arith.divf %165, %166 : vector<1x256xf32>
    %168 = vector.broadcast %167 : vector<1x256xf32> to vector<16x256xf32>
    %169 = arith.subf %161, %168 : vector<16x256xf32>
    %170 = arith.mulf %169, %169 : vector<16x256xf32>
    %cst_53 = arith.constant dense<0.000000e+00> : vector<256xf32>
    %171 = vector.multi_reduction <add>, %170, %cst_53 [0] : vector<16x256xf32> to vector<256xf32>
    %172 = vector.shape_cast %171 : vector<256xf32> to vector<1x256xf32>
    %cst_54 = arith.constant 1.600000e+01 : f32
    %173 = vector.broadcast %cst_54 : f32 to vector<1x256xf32>
    %174 = arith.divf %172, %173 : vector<1x256xf32>
    %175 = vector.broadcast %167 : vector<1x256xf32> to vector<16x256xf32>
    %176 = arith.subf %161, %175 : vector<16x256xf32>
    %cst_55 = arith.constant 9.99999997E-7 : f32
    %177 = vector.broadcast %cst_55 : f32 to vector<1x256xf32>
    %178 = arith.addf %174, %177 : vector<1x256xf32>
    %179 = math.sqrt %178 : vector<1x256xf32>
    %180 = vector.broadcast %179 : vector<1x256xf32> to vector<16x256xf32>
    %181 = arith.divf %176, %180 : vector<16x256xf32>
    %182 = vector.broadcast %162 : vector<16x1xf32> to vector<16x256xf32>
    %183 = arith.mulf %182, %181 : vector<16x256xf32>
    %184 = vector.broadcast %163 : vector<16x1xf32> to vector<16x256xf32>
    %185 = arith.addf %183, %184 : vector<16x256xf32>
    %c0_56 = arith.constant 0 : index
    %c0_57 = arith.constant 0 : index
    %186 = vector.load %arg17[%c0_56, %c0_57] : memref<16x16xf32, #tpu.memory_space<vmem>>, vector<16x16xf32>
    %cst_58 = arith.constant dense<0.000000e+00> : vector<16x256xf32>
    %187 = tpu.matmul %186, %185, %cst_58 {dimension_numbers = #tpu.dot_dimension_numbers<[1], [0], [0], [1], [0, 0, 1, 1], [], []>} : vector<16x16xf32>, vector<16x256xf32>, vector<16x256xf32> -> vector<16x256xf32>
    %c0_59 = arith.constant 0 : index
    %c0_60 = arith.constant 0 : index
    %188 = vector.load %arg18[%c0_59, %c0_60] : memref<16x1xf32, #tpu.memory_space<vmem>>, vector<16x1xf32>
    %189 = vector.broadcast %188 : vector<16x1xf32> to vector<16x256xf32>
    %190 = arith.addf %187, %189 : vector<16x256xf32>
    %c0_61 = arith.constant 0 : index
    %c0_62 = arith.constant 0 : index
    %191 = vector.load %arg19[%c0_61, %c0_62] : memref<16x16xf32, #tpu.memory_space<vmem>>, vector<16x16xf32>
    %cst_63 = arith.constant dense<0.000000e+00> : vector<16x256xf32>
    %192 = tpu.matmul %191, %185, %cst_63 {dimension_numbers = #tpu.dot_dimension_numbers<[1], [0], [0], [1], [0, 0, 1, 1], [], []>} : vector<16x16xf32>, vector<16x256xf32>, vector<16x256xf32> -> vector<16x256xf32>
    %c0_64 = arith.constant 0 : index
    %c0_65 = arith.constant 0 : index
    %193 = vector.load %arg20[%c0_64, %c0_65] : memref<16x1xf32, #tpu.memory_space<vmem>>, vector<16x1xf32>
    %194 = vector.broadcast %193 : vector<16x1xf32> to vector<16x256xf32>
    %195 = arith.addf %192, %194 : vector<16x256xf32>
    %196 = arith.mulf %190, %195 : vector<16x256xf32>
    %c0_66 = arith.constant 0 : index
    %c0_67 = arith.constant 0 : index
    %197 = vector.load %arg21[%c0_66, %c0_67] : memref<16x16xf32, #tpu.memory_space<vmem>>, vector<16x16xf32>
    %cst_68 = arith.constant dense<0.000000e+00> : vector<16x256xf32>
    %198 = tpu.matmul %197, %196, %cst_68 {dimension_numbers = #tpu.dot_dimension_numbers<[1], [0], [0], [1], [0, 0, 1, 1], [], []>} : vector<16x16xf32>, vector<16x256xf32>, vector<16x256xf32> -> vector<16x256xf32>
    %c0_69 = arith.constant 0 : index
    %c0_70 = arith.constant 0 : index
    %199 = vector.load %arg22[%c0_69, %c0_70] : memref<16x1xf32, #tpu.memory_space<vmem>>, vector<16x1xf32>
    %200 = vector.broadcast %199 : vector<16x1xf32> to vector<16x256xf32>
    %201 = arith.addf %198, %200 : vector<16x256xf32>
    %202 = arith.addf %161, %201 : vector<16x256xf32>
    %c0_71 = arith.constant 0 : index
    %c0_72 = arith.constant 0 : index
    %203 = vector.load %arg23[%c0_71, %c0_72] : memref<3x144xf32, #tpu.memory_space<vmem>>, vector<3x144xf32>
    %c0_73 = arith.constant 0 : index
    %c0_74 = arith.constant 0 : index
    %204 = vector.load %arg24[%c0_73, %c0_74] : memref<3x1xf32, #tpu.memory_space<vmem>>, vector<3x1xf32>
    %c17_i32_75 = arith.constant 17 : i32
    %205 = tpu.dynamic_rotate %202 by %c17_i32_75 dim 1 : vector<16x256xf32>, i32 -> vector<16x256xf32>
    %206 = vector.extract_strided_slice %0 {offsets = [0, 0], sizes = [1, 256], strides = [1, 1]} : vector<9x256xf32> to vector<1x256xf32>
    %207 = vector.broadcast %206 : vector<1x256xf32> to vector<16x256xf32>
    %208 = arith.mulf %205, %207 : vector<16x256xf32>
    %c16_i32_76 = arith.constant 16 : i32
    %209 = tpu.dynamic_rotate %202 by %c16_i32_76 dim 1 : vector<16x256xf32>, i32 -> vector<16x256xf32>
    %210 = vector.extract_strided_slice %0 {offsets = [1, 0], sizes = [1, 256], strides = [1, 1]} : vector<9x256xf32> to vector<1x256xf32>
    %211 = vector.broadcast %210 : vector<1x256xf32> to vector<16x256xf32>
    %212 = arith.mulf %209, %211 : vector<16x256xf32>
    %c15_i32_77 = arith.constant 15 : i32
    %213 = tpu.dynamic_rotate %202 by %c15_i32_77 dim 1 : vector<16x256xf32>, i32 -> vector<16x256xf32>
    %214 = vector.extract_strided_slice %0 {offsets = [2, 0], sizes = [1, 256], strides = [1, 1]} : vector<9x256xf32> to vector<1x256xf32>
    %215 = vector.broadcast %214 : vector<1x256xf32> to vector<16x256xf32>
    %216 = arith.mulf %213, %215 : vector<16x256xf32>
    %c1_i32_78 = arith.constant 1 : i32
    %217 = tpu.dynamic_rotate %202 by %c1_i32_78 dim 1 : vector<16x256xf32>, i32 -> vector<16x256xf32>
    %218 = vector.extract_strided_slice %0 {offsets = [3, 0], sizes = [1, 256], strides = [1, 1]} : vector<9x256xf32> to vector<1x256xf32>
    %219 = vector.broadcast %218 : vector<1x256xf32> to vector<16x256xf32>
    %220 = arith.mulf %217, %219 : vector<16x256xf32>
    %c255_i32_79 = arith.constant 255 : i32
    %221 = tpu.dynamic_rotate %202 by %c255_i32_79 dim 1 : vector<16x256xf32>, i32 -> vector<16x256xf32>
    %222 = vector.extract_strided_slice %0 {offsets = [5, 0], sizes = [1, 256], strides = [1, 1]} : vector<9x256xf32> to vector<1x256xf32>
    %223 = vector.broadcast %222 : vector<1x256xf32> to vector<16x256xf32>
    %224 = arith.mulf %221, %223 : vector<16x256xf32>
    %c241_i32_80 = arith.constant 241 : i32
    %225 = tpu.dynamic_rotate %202 by %c241_i32_80 dim 1 : vector<16x256xf32>, i32 -> vector<16x256xf32>
    %226 = vector.extract_strided_slice %0 {offsets = [6, 0], sizes = [1, 256], strides = [1, 1]} : vector<9x256xf32> to vector<1x256xf32>
    %227 = vector.broadcast %226 : vector<1x256xf32> to vector<16x256xf32>
    %228 = arith.mulf %225, %227 : vector<16x256xf32>
    %c240_i32_81 = arith.constant 240 : i32
    %229 = tpu.dynamic_rotate %202 by %c240_i32_81 dim 1 : vector<16x256xf32>, i32 -> vector<16x256xf32>
    %230 = vector.extract_strided_slice %0 {offsets = [7, 0], sizes = [1, 256], strides = [1, 1]} : vector<9x256xf32> to vector<1x256xf32>
    %231 = vector.broadcast %230 : vector<1x256xf32> to vector<16x256xf32>
    %232 = arith.mulf %229, %231 : vector<16x256xf32>
    %c239_i32_82 = arith.constant 239 : i32
    %233 = tpu.dynamic_rotate %202 by %c239_i32_82 dim 1 : vector<16x256xf32>, i32 -> vector<16x256xf32>
    %234 = vector.extract_strided_slice %0 {offsets = [8, 0], sizes = [1, 256], strides = [1, 1]} : vector<9x256xf32> to vector<1x256xf32>
    %235 = vector.broadcast %234 : vector<1x256xf32> to vector<16x256xf32>
    %236 = arith.mulf %233, %235 : vector<16x256xf32>
    %237 = tpu.concatenate %208, %212, %216, %220, %202, %224, %228, %232, %236 in 0 : vector<16x256xf32>, vector<16x256xf32>, vector<16x256xf32>, vector<16x256xf32>, vector<16x256xf32>, vector<16x256xf32>, vector<16x256xf32>, vector<16x256xf32>, vector<16x256xf32> -> vector<144x256xf32>
    %cst_83 = arith.constant dense<0.000000e+00> : vector<3x256xf32>
    %238 = tpu.matmul %203, %237, %cst_83 {dimension_numbers = #tpu.dot_dimension_numbers<[1], [0], [0], [1], [0, 0, 1, 1], [], []>} : vector<3x144xf32>, vector<144x256xf32>, vector<3x256xf32> -> vector<3x256xf32>
    %239 = vector.broadcast %204 : vector<3x1xf32> to vector<3x256xf32>
    %240 = arith.addf %238, %239 : vector<3x256xf32>
    %241 = vector.extract_strided_slice %2 {offsets = [0, 0], sizes = [3, 256], strides = [1, 1]} : vector<8x256xf32> to vector<3x256xf32>
    %242 = arith.addf %240, %241 : vector<3x256xf32>
    %c0_84 = arith.constant 0 : index
    %c0_85 = arith.constant 0 : index
    %c0_86 = arith.constant 0 : index
    %243 = vector.load %arg25[%c0_84, %c0_85, %c0_86] : memref<1x3x256xf32, #tpu.memory_space<vmem>>, vector<1x3x256xf32>
    %244 = vector.shape_cast %243 : vector<1x3x256xf32> to vector<3x256xf32>
    %245 = vector.shape_cast %242 : vector<3x256xf32> to vector<1x3x256xf32>
    tpu.vector_store %arg25[%c0_84, %c0_85, %c0_86], %245 {strides = array<i32>} : memref<1x3x256xf32, #tpu.memory_space<vmem>>, vector<1x3x256xf32>,
    return
  }
  func.func @transform_0(%arg0: i32) -> (i32, i32, i32) {
    %c0_i32 = arith.constant 0 : i32
    %c0_i32_0 = arith.constant 0 : i32
    %c0_i32_1 = arith.constant 0 : i32
    return %arg0, %c0_i32, %c0_i32_0 : i32, i32, i32
  }
  func.func @transform_1(%arg0: i32) -> (i32, i32) {
    %c0_i32 = arith.constant 0 : i32
    %c0_i32_0 = arith.constant 0 : i32
    %c0_i32_1 = arith.constant 0 : i32
    return %c0_i32, %c0_i32_0 : i32, i32
  }
  func.func @transform_2(%arg0: i32) -> (i32, i32) {
    %c0_i32 = arith.constant 0 : i32
    %c0_i32_0 = arith.constant 0 : i32
    %c0_i32_1 = arith.constant 0 : i32
    return %c0_i32, %c0_i32_0 : i32, i32
  }
  func.func @transform_3(%arg0: i32) -> (i32, i32) {
    %c0_i32 = arith.constant 0 : i32
    %c0_i32_0 = arith.constant 0 : i32
    %c0_i32_1 = arith.constant 0 : i32
    return %c0_i32, %c0_i32_0 : i32, i32
  }
  func.func @transform_4(%arg0: i32) -> (i32, i32) {
    %c0_i32 = arith.constant 0 : i32
    %c0_i32_0 = arith.constant 0 : i32
    %c0_i32_1 = arith.constant 0 : i32
    return %c0_i32, %c0_i32_0 : i32, i32
  }
  func.func @transform_5(%arg0: i32) -> (i32, i32) {
    %c0_i32 = arith.constant 0 : i32
    %c0_i32_0 = arith.constant 0 : i32
    %c0_i32_1 = arith.constant 0 : i32
    return %c0_i32, %c0_i32_0 : i32, i32
  }
  func.func @transform_6(%arg0: i32) -> (i32, i32) {
    %c0_i32 = arith.constant 0 : i32
    %c0_i32_0 = arith.constant 0 : i32
    %c0_i32_1 = arith.constant 0 : i32
    return %c0_i32, %c0_i32_0 : i32, i32
  }
  func.func @transform_7(%arg0: i32) -> (i32, i32) {
    %c0_i32 = arith.constant 0 : i32
    %c0_i32_0 = arith.constant 0 : i32
    %c0_i32_1 = arith.constant 0 : i32
    return %c0_i32, %c0_i32_0 : i32, i32
  }
  func.func @transform_8(%arg0: i32) -> (i32, i32) {
    %c0_i32 = arith.constant 0 : i32
    %c0_i32_0 = arith.constant 0 : i32
    %c0_i32_1 = arith.constant 0 : i32
    return %c0_i32, %c0_i32_0 : i32, i32
  }
  func.func @transform_9(%arg0: i32) -> (i32, i32) {
    %c0_i32 = arith.constant 0 : i32
    %c0_i32_0 = arith.constant 0 : i32
    %c0_i32_1 = arith.constant 0 : i32
    return %c0_i32, %c0_i32_0 : i32, i32
  }
  func.func @transform_10(%arg0: i32) -> (i32, i32) {
    %c0_i32 = arith.constant 0 : i32
    %c0_i32_0 = arith.constant 0 : i32
    %c0_i32_1 = arith.constant 0 : i32
    return %c0_i32, %c0_i32_0 : i32, i32
  }
  func.func @transform_11(%arg0: i32) -> (i32, i32) {
    %c0_i32 = arith.constant 0 : i32
    %c0_i32_0 = arith.constant 0 : i32
    %c0_i32_1 = arith.constant 0 : i32
    return %c0_i32, %c0_i32_0 : i32, i32
  }
  func.func @transform_12(%arg0: i32) -> (i32, i32) {
    %c0_i32 = arith.constant 0 : i32
    %c0_i32_0 = arith.constant 0 : i32
    %c0_i32_1 = arith.constant 0 : i32
    return %c0_i32, %c0_i32_0 : i32, i32
  }
  func.func @transform_13(%arg0: i32) -> (i32, i32) {
    %c0_i32 = arith.constant 0 : i32
    %c0_i32_0 = arith.constant 0 : i32
    %c0_i32_1 = arith.constant 0 : i32
    return %c0_i32, %c0_i32_0 : i32, i32
  }
  func.func @transform_14(%arg0: i32) -> (i32, i32) {
    %c0_i32 = arith.constant 0 : i32
    %c0_i32_0 = arith.constant 0 : i32
    %c0_i32_1 = arith.constant 0 : i32
    return %c0_i32, %c0_i32_0 : i32, i32
  }
  func.func @transform_15(%arg0: i32) -> (i32, i32) {
    %c0_i32 = arith.constant 0 : i32
    %c0_i32_0 = arith.constant 0 : i32
    %c0_i32_1 = arith.constant 0 : i32
    return %c0_i32, %c0_i32_0 : i32, i32
  }
  func.func @transform_16(%arg0: i32) -> (i32, i32) {
    %c0_i32 = arith.constant 0 : i32
    %c0_i32_0 = arith.constant 0 : i32
    %c0_i32_1 = arith.constant 0 : i32
    return %c0_i32, %c0_i32_0 : i32, i32
  }
  func.func @transform_17(%arg0: i32) -> (i32, i32) {
    %c0_i32 = arith.constant 0 : i32
    %c0_i32_0 = arith.constant 0 : i32
    %c0_i32_1 = arith.constant 0 : i32
    return %c0_i32, %c0_i32_0 : i32, i32
  }
  func.func @transform_18(%arg0: i32) -> (i32, i32) {
    %c0_i32 = arith.constant 0 : i32
    %c0_i32_0 = arith.constant 0 : i32
    %c0_i32_1 = arith.constant 0 : i32
    return %c0_i32, %c0_i32_0 : i32, i32
  }
  func.func @transform_19(%arg0: i32) -> (i32, i32) {
    %c0_i32 = arith.constant 0 : i32
    %c0_i32_0 = arith.constant 0 : i32
    %c0_i32_1 = arith.constant 0 : i32
    return %c0_i32, %c0_i32_0 : i32, i32
  }
  func.func @transform_20(%arg0: i32) -> (i32, i32) {
    %c0_i32 = arith.constant 0 : i32
    %c0_i32_0 = arith.constant 0 : i32
    %c0_i32_1 = arith.constant 0 : i32
    return %c0_i32, %c0_i32_0 : i32, i32
  }
  func.func @transform_21(%arg0: i32) -> (i32, i32) {
    %c0_i32 = arith.constant 0 : i32
    %c0_i32_0 = arith.constant 0 : i32
    %c0_i32_1 = arith.constant 0 : i32
    return %c0_i32, %c0_i32_0 : i32, i32
  }
  func.func @transform_22(%arg0: i32) -> (i32, i32) {
    %c0_i32 = arith.constant 0 : i32
    %c0_i32_0 = arith.constant 0 : i32
    %c0_i32_1 = arith.constant 0 : i32
    return %c0_i32, %c0_i32_0 : i32, i32
  }
  func.func @transform_23(%arg0: i32) -> (i32, i32) {
    %c0_i32 = arith.constant 0 : i32
    %c0_i32_0 = arith.constant 0 : i32
    %c0_i32_1 = arith.constant 0 : i32
    return %c0_i32, %c0_i32_0 : i32, i32
  }
  func.func @transform_24(%arg0: i32) -> (i32, i32, i32) {
    %c0_i32 = arith.constant 0 : i32
    %c0_i32_0 = arith.constant 0 : i32
    %c0_i32_1 = arith.constant 0 : i32
    return %arg0, %c0_i32, %c0_i32_0 : i32, i32, i32
  }
}

</mosaic_0001>

<llo_original>
// kernel: tpu_custom_call.1
$region0: #{tpu_custom_call.1}
  #allocation0 [shape = 'u32[]', space=smem, size = 0x4, offset = 0x4, fixed_abs, tag = 'smem constant byte address 0x4 - core index']
  #allocation1 [shape = 'u32[72,128]{1,0:T(1,128)}', space=vmem, size = 0x9000, scoped, tag = 'internal scratch']
  %s0 = inlined_call_operand.vmem [shape: f32[2,8,256], index: 0, kind: input, shape index: {}]
  %s1 = inlined_call_operand.vmem [shape: f32[9,256], index: 1, kind: input, shape index: {}]
  %s2 = inlined_call_operand.vmem [shape: f32[16,72], index: 2, kind: input, shape index: {}]
  %s3 = inlined_call_operand.vmem [shape: f32[16,1], index: 3, kind: input, shape index: {}]
  %s4 = inlined_call_operand.vmem [shape: f32[16,1], index: 4, kind: input, shape index: {}]
  %s5 = inlined_call_operand.vmem [shape: f32[16,1], index: 5, kind: input, shape index: {}]
  %s6 = inlined_call_operand.vmem [shape: f32[32,16], index: 6, kind: input, shape index: {}]
  %s7 = inlined_call_operand.vmem [shape: f32[32,1], index: 7, kind: input, shape index: {}]
  %s8 = inlined_call_operand.vmem [shape: f32[32,9], index: 8, kind: input, shape index: {}]
  %s9 = inlined_call_operand.vmem [shape: f32[32,1], index: 9, kind: input, shape index: {}]
  %s10 = inlined_call_operand.vmem [shape: f32[16,16], index: 10, kind: input, shape index: {}]
  %s11 = inlined_call_operand.vmem [shape: f32[16,1], index: 11, kind: input, shape index: {}]
  %s12 = inlined_call_operand.vmem [shape: f32[16,16], index: 12, kind: input, shape index: {}]
  %s13 = inlined_call_operand.vmem [shape: f32[16,1], index: 13, kind: input, shape index: {}]
  %s14 = inlined_call_operand.vmem [shape: f32[16,1], index: 14, kind: input, shape index: {}]
  %s15 = inlined_call_operand.vmem [shape: f32[16,1], index: 15, kind: input, shape index: {}]
  %s16 = inlined_call_operand.vmem [shape: f32[16,16], index: 16, kind: input, shape index: {}]
  %s17 = inlined_call_operand.vmem [shape: f32[16,1], index: 17, kind: input, shape index: {}]
  %s18 = inlined_call_operand.vmem [shape: f32[16,16], index: 18, kind: input, shape index: {}]
  %s19 = inlined_call_operand.vmem [shape: f32[16,1], index: 19, kind: input, shape index: {}]
  %s20 = inlined_call_operand.vmem [shape: f32[16,16], index: 20, kind: input, shape index: {}]
  %s21 = inlined_call_operand.vmem [shape: f32[16,1], index: 21, kind: input, shape index: {}]
  %s22 = inlined_call_operand.vmem [shape: f32[3,144], index: 22, kind: input, shape index: {}]
  %s23 = inlined_call_operand.vmem [shape: f32[3,1], index: 23, kind: input, shape index: {}]
  %s24 = inlined_call_operand.vmem [shape: f32[2,3,256], index: 24, kind: output, shape index: {}]
  %s25 = sld [smem:[#allocation0]]
  $region129: #{tpu_custom_call.1} parent=0
    _
  %s27 = ssub.s32 1, %s25
  %s28 = scalar_select 0, %s27, %s25
  loop: start=0, step=1, limit=4
  $region2: #{tpu_custom_call.1} parent=0 // loop_pre_header
    _
  $region3: #{tpu_custom_call.1} parent=0 // loop_header
    %s30 = sphi 0, %s34
    %p31 = scmp.ge.s32.totalorder %s30, 4
    %s40 = sphi 0, %s42
    %s43 = sphi 0, %s40
    %s44 = sphi 0, %s43
    %s60 = sphi 0, %s44
    %s64 = sphi 0, %s64
    %s66 = sphi 0, %s64
    %s67 = sphi 0, %s66
    %s81 = sphi 0, %s67
    %s85 = sphi 0, %s85
    %s87 = sphi 0, %s85
    %s88 = sphi 0, %s87
    %s102 = sphi 0, %s88
    %s106 = sphi 0, %s106
    %s108 = sphi 0, %s106
    %s109 = sphi 0, %s108
    %s123 = sphi 0, %s109
    %s127 = sphi 0, %s127
    %s129 = sphi 0, %s127
    %s130 = sphi 0, %s129
    %s144 = sphi 0, %s130
    %s148 = sphi 0, %s148
    %s150 = sphi 0, %s148
    %s151 = sphi 0, %s150
    %s165 = sphi 0, %s151
    %s169 = sphi 0, %s169
    %s171 = sphi 0, %s169
    %s172 = sphi 0, %s171
    %s186 = sphi 0, %s172
    %s190 = sphi 0, %s190
    %s192 = sphi 0, %s190
    %s193 = sphi 0, %s192
    %s207 = sphi 0, %s193
    %s211 = sphi 0, %s211
    %s213 = sphi 0, %s211
    %s214 = sphi 0, %s213
    %s228 = sphi 0, %s214
    %s232 = sphi 0, %s232
    %s234 = sphi 0, %s232
    %s235 = sphi 0, %s234
    %s249 = sphi 0, %s235
    %s253 = sphi 0, %s253
    %s255 = sphi 0, %s253
    %s256 = sphi 0, %s255
    %s270 = sphi 0, %s256
    %s274 = sphi 0, %s274
    %s276 = sphi 0, %s274
    %s277 = sphi 0, %s276
    %s291 = sphi 0, %s277
    %s295 = sphi 0, %s295
    %s297 = sphi 0, %s295
    %s298 = sphi 0, %s297
    %s312 = sphi 0, %s298
    %s316 = sphi 0, %s316
    %s318 = sphi 0, %s316
    %s319 = sphi 0, %s318
    %s333 = sphi 0, %s319
    %s337 = sphi 0, %s337
    %s339 = sphi 0, %s337
    %s340 = sphi 0, %s339
    %s354 = sphi 0, %s340
    %s358 = sphi 0, %s358
    %s360 = sphi 0, %s358
    %s361 = sphi 0, %s360
    %s375 = sphi 0, %s361
    %s379 = sphi 0, %s379
    %s381 = sphi 0, %s379
    %s382 = sphi 0, %s381
    %s396 = sphi 0, %s382
    %s400 = sphi 0, %s400
    %s402 = sphi 0, %s400
    %s403 = sphi 0, %s402
    %s417 = sphi 0, %s403
    %s421 = sphi 0, %s421
    %s423 = sphi 0, %s421
    %s424 = sphi 0, %s423
    %s438 = sphi 0, %s424
    %s442 = sphi 0, %s442
    %s444 = sphi 0, %s442
    %s445 = sphi 0, %s444
    %s459 = sphi 0, %s445
    %s463 = sphi 0, %s463
    %s465 = sphi 0, %s463
    %s466 = sphi 0, %s465
    %s480 = sphi 0, %s466
    %s484 = sphi 0, %s484
    %s486 = sphi 0, %s484
    %s487 = sphi 0, %s486
    %s501 = sphi 0, %s487
    %s505 = sphi 0, %s505
    %s507 = sphi 0, %s505
    %s508 = sphi 0, %s507
    %s522 = sphi 0, %s508
    %s526 = sphi 0, %s526
    %s528 = sphi 0, %s526
    %s529 = sphi 0, %s528
    %s543 = sphi 0, %s529
    %s549 = sphi 0, %s551
    %s552 = sphi 0, %s549
    %s553 = sphi 0, %s552
    %s569 = sphi 0, %s553
  $region4: #{tpu_custom_call.1} parent=0 // loop_header_branch
    %33 = sbr.rel (%p31) target = $region8
  $region5: #{tpu_custom_call.1} parent=0 // loop_body
    %s35 = ssub.s32 %s30, 1
    %s36 = ssub.s32 %s30, 2
    %s37 = sadd.s32 %s30, 1
    %s38 = ssub.s32 %s30, %s37
    %p39 = scmp.eq.s32.totalorder %s38, 0
    %s41 = sadd.s32 %s40, 1
    %s42 = scalar_select %p39, %s40, %s41
    %p45 = pneg %p39
    %p46 = scmp.eq.s32.totalorder %s30, 1
    %p47 = por %p45, %p46
    %p48 = scmp.ne.s32.totalorder %s40, %s43
    %p49 = scmp.eq.s32.totalorder %s30, 0
    %p50 = por %p48, %p49
    %p51 = scmp.ne.s32.totalorder %s40, %s43
    %p52 = scmp.eq.s32.totalorder %s35, 1
    %p53 = por %p51, %p52
    %p54 = scmp.ne.s32.totalorder %s43, %s44
    %p55 = scmp.eq.s32.totalorder %s35, 0
    %p56 = por %p54, %p55
    %p57 = scmp.ne.s32.totalorder %s43, %s44
    %p58 = scmp.eq.s32.totalorder %s36, 1
    %p59 = por %p57, %p58
    %p61 = scmp.ne.s32.totalorder %s44, %s60
    %p62 = scmp.eq.s32.totalorder %s36, 0
    %p63 = por %p61, %p62
    %s65 = sadd.s32 %s64, 1
    %p68 = scmp.eq.s32.totalorder %s30, 1
    %p69 = scmp.ne.s32.totalorder %s64, %s66
    %p70 = scmp.eq.s32.totalorder %s30, 0
    %p71 = por %p69, %p70
    %p72 = scmp.ne.s32.totalorder %s64, %s66
    %p73 = scmp.eq.s32.totalorder %s35, 1
    %p74 = por %p72, %p73
    %p75 = scmp.ne.s32.totalorder %s66, %s67
    %p76 = scmp.eq.s32.totalorder %s35, 0
    %p77 = por %p75, %p76
    %p78 = scmp.ne.s32.totalorder %s66, %s67
    %p79 = scmp.eq.s32.totalorder %s36, 1
    %p80 = por %p78, %p79
    %p82 = scmp.ne.s32.totalorder %s67, %s81
    %p83 = scmp.eq.s32.totalorder %s36, 0
    %p84 = por %p82, %p83
    %s86 = sadd.s32 %s85, 1
    %p89 = scmp.eq.s32.totalorder %s30, 1
    %p90 = scmp.ne.s32.totalorder %s85, %s87
    %p91 = scmp.eq.s32.totalorder %s30, 0
    %p92 = por %p90, %p91
    %p93 = scmp.ne.s32.totalorder %s85, %s87
    %p94 = scmp.eq.s32.totalorder %s35, 1
    %p95 = por %p93, %p94
    %p96 = scmp.ne.s32.totalorder %s87, %s88
    %p97 = scmp.eq.s32.totalorder %s35, 0
    %p98 = por %p96, %p97
    %p99 = scmp.ne.s32.totalorder %s87, %s88
    %p100 = scmp.eq.s32.totalorder %s36, 1
    %p101 = por %p99, %p100
    %p103 = scmp.ne.s32.totalorder %s88, %s102
    %p104 = scmp.eq.s32.totalorder %s36, 0
    %p105 = por %p103, %p104
    %s107 = sadd.s32 %s106, 1
    %p110 = scmp.eq.s32.totalorder %s30, 1
    %p111 = scmp.ne.s32.totalorder %s106, %s108
    %p112 = scmp.eq.s32.totalorder %s30, 0
    %p113 = por %p111, %p112
    %p114 = scmp.ne.s32.totalorder %s106, %s108
    %p115 = scmp.eq.s32.totalorder %s35, 1
    %p116 = por %p114, %p115
    %p117 = scmp.ne.s32.totalorder %s108, %s109
    %p118 = scmp.eq.s32.totalorder %s35, 0
    %p119 = por %p117, %p118
    %p120 = scmp.ne.s32.totalorder %s108, %s109
    %p121 = scmp.eq.s32.totalorder %s36, 1
    %p122 = por %p120, %p121
    %p124 = scmp.ne.s32.totalorder %s109, %s123
    %p125 = scmp.eq.s32.totalorder %s36, 0
    %p126 = por %p124, %p125
    %s128 = sadd.s32 %s127, 1
    %p131 = scmp.eq.s32.totalorder %s30, 1
    %p132 = scmp.ne.s32.totalorder %s127, %s129
    %p133 = scmp.eq.s32.totalorder %s30, 0
    %p134 = por %p132, %p133
    %p135 = scmp.ne.s32.totalorder %s127, %s129
    %p136 = scmp.eq.s32.totalorder %s35, 1
    %p137 = por %p135, %p136
    %p138 = scmp.ne.s32.totalorder %s129, %s130
    %p139 = scmp.eq.s32.totalorder %s35, 0
    %p140 = por %p138, %p139
    %p141 = scmp.ne.s32.totalorder %s129, %s130
    %p142 = scmp.eq.s32.totalorder %s36, 1
    %p143 = por %p141, %p142
    %p145 = scmp.ne.s32.totalorder %s130, %s144
    %p146 = scmp.eq.s32.totalorder %s36, 0
    %p147 = por %p145, %p146
    %s149 = sadd.s32 %s148, 1
    %p152 = scmp.eq.s32.totalorder %s30, 1
    %p153 = scmp.ne.s32.totalorder %s148, %s150
    %p154 = scmp.eq.s32.totalorder %s30, 0
    %p155 = por %p153, %p154
    %p156 = scmp.ne.s32.totalorder %s148, %s150
    %p157 = scmp.eq.s32.totalorder %s35, 1
    %p158 = por %p156, %p157
    %p159 = scmp.ne.s32.totalorder %s150, %s151
    %p160 = scmp.eq.s32.totalorder %s35, 0
    %p161 = por %p159, %p160
    %p162 = scmp.ne.s32.totalorder %s150, %s151
    %p163 = scmp.eq.s32.totalorder %s36, 1
    %p164 = por %p162, %p163
    %p166 = scmp.ne.s32.totalorder %s151, %s165
    %p167 = scmp.eq.s32.totalorder %s36, 0
    %p168 = por %p166, %p167
    %s170 = sadd.s32 %s169, 1
    %p173 = scmp.eq.s32.totalorder %s30, 1
    %p174 = scmp.ne.s32.totalorder %s169, %s171
    %p175 = scmp.eq.s32.totalorder %s30, 0
    %p176 = por %p174, %p175
    %p177 = scmp.ne.s32.totalorder %s169, %s171
    %p178 = scmp.eq.s32.totalorder %s35, 1
    %p179 = por %p177, %p178
    %p180 = scmp.ne.s32.totalorder %s171, %s172
    %p181 = scmp.eq.s32.totalorder %s35, 0
    %p182 = por %p180, %p181
    %p183 = scmp.ne.s32.totalorder %s171, %s172
    %p184 = scmp.eq.s32.totalorder %s36, 1
    %p185 = por %p183, %p184
    %p187 = scmp.ne.s32.totalorder %s172, %s186
    %p188 = scmp.eq.s32.totalorder %s36, 0
    %p189 = por %p187, %p188
    %s191 = sadd.s32 %s190, 1
    %p194 = scmp.eq.s32.totalorder %s30, 1
    %p195 = scmp.ne.s32.totalorder %s190, %s192
    %p196 = scmp.eq.s32.totalorder %s30, 0
    %p197 = por %p195, %p196
    %p198 = scmp.ne.s32.totalorder %s190, %s192
    %p199 = scmp.eq.s32.totalorder %s35, 1
    %p200 = por %p198, %p199
    %p201 = scmp.ne.s32.totalorder %s192, %s193
    %p202 = scmp.eq.s32.totalorder %s35, 0
    %p203 = por %p201, %p202
    %p204 = scmp.ne.s32.totalorder %s192, %s193
    %p205 = scmp.eq.s32.totalorder %s36, 1
    %p206 = por %p204, %p205
    %p208 = scmp.ne.s32.totalorder %s193, %s207
    %p209 = scmp.eq.s32.totalorder %s36, 0
    %p210 = por %p208, %p209
    %s212 = sadd.s32 %s211, 1
    %p215 = scmp.eq.s32.totalorder %s30, 1
    %p216 = scmp.ne.s32.totalorder %s211, %s213
    %p217 = scmp.eq.s32.totalorder %s30, 0
    %p218 = por %p216, %p217
    %p219 = scmp.ne.s32.totalorder %s211, %s213
    %p220 = scmp.eq.s32.totalorder %s35, 1
    %p221 = por %p219, %p220
    %p222 = scmp.ne.s32.totalorder %s213, %s214
    %p223 = scmp.eq.s32.totalorder %s35, 0
    %p224 = por %p222, %p223
    %p225 = scmp.ne.s32.totalorder %s213, %s214
    %p226 = scmp.eq.s32.totalorder %s36, 1
    %p227 = por %p225, %p226
    %p229 = scmp.ne.s32.totalorder %s214, %s228
    %p230 = scmp.eq.s32.totalorder %s36, 0
    %p231 = por %p229, %p230
    %s233 = sadd.s32 %s232, 1
    %p236 = scmp.eq.s32.totalorder %s30, 1
    %p237 = scmp.ne.s32.totalorder %s232, %s234
    %p238 = scmp.eq.s32.totalorder %s30, 0
    %p239 = por %p237, %p238
    %p240 = scmp.ne.s32.totalorder %s232, %s234
    %p241 = scmp.eq.s32.totalorder %s35, 1
    %p242 = por %p240, %p241
    %p243 = scmp.ne.s32.totalorder %s234, %s235
    %p244 = scmp.eq.s32.totalorder %s35, 0
    %p245 = por %p243, %p244
    %p246 = scmp.ne.s32.totalorder %s234, %s235
    %p247 = scmp.eq.s32.totalorder %s36, 1
    %p248 = por %p246, %p247
    %p250 = scmp.ne.s32.totalorder %s235, %s249
    %p251 = scmp.eq.s32.totalorder %s36, 0
    %p252 = por %p250, %p251
    %s254 = sadd.s32 %s253, 1
    %p257 = scmp.eq.s32.totalorder %s30, 1
    %p258 = scmp.ne.s32.totalorder %s253, %s255
    %p259 = scmp.eq.s32.totalorder %s30, 0
    %p260 = por %p258, %p259
    %p261 = scmp.ne.s32.totalorder %s253, %s255
    %p262 = scmp.eq.s32.totalorder %s35, 1
    %p263 = por %p261, %p262
    %p264 = scmp.ne.s32.totalorder %s255, %s256
    %p265 = scmp.eq.s32.totalorder %s35, 0
    %p266 = por %p264, %p265
    %p267 = scmp.ne.s32.totalorder %s255, %s256
    %p268 = scmp.eq.s32.totalorder %s36, 1
    %p269 = por %p267, %p268
    %p271 = scmp.ne.s32.totalorder %s256, %s270
    %p272 = scmp.eq.s32.totalorder %s36, 0
    %p273 = por %p271, %p272
    %s275 = sadd.s32 %s274, 1
    %p278 = scmp.eq.s32.totalorder %s30, 1
    %p279 = scmp.ne.s32.totalorder %s274, %s276
    %p280 = scmp.eq.s32.totalorder %s30, 0
    %p281 = por %p279, %p280
    %p282 = scmp.ne.s32.totalorder %s274, %s276
    %p283 = scmp.eq.s32.totalorder %s35, 1
    %p284 = por %p282, %p283
    %p285 = scmp.ne.s32.totalorder %s276, %s277
    %p286 = scmp.eq.s32.totalorder %s35, 0
    %p287 = por %p285, %p286
    %p288 = scmp.ne.s32.totalorder %s276, %s277
    %p289 = scmp.eq.s32.totalorder %s36, 1
    %p290 = por %p288, %p289
    %p292 = scmp.ne.s32.totalorder %s277, %s291
    %p293 = scmp.eq.s32.totalorder %s36, 0
    %p294 = por %p292, %p293
    %s296 = sadd.s32 %s295, 1
    %p299 = scmp.eq.s32.totalorder %s30, 1
    %p300 = scmp.ne.s32.totalorder %s295, %s297
    %p301 = scmp.eq.s32.totalorder %s30, 0
    %p302 = por %p300, %p301
    %p303 = scmp.ne.s32.totalorder %s295, %s297
    %p304 = scmp.eq.s32.totalorder %s35, 1
    %p305 = por %p303, %p304
    %p306 = scmp.ne.s32.totalorder %s297, %s298
    %p307 = scmp.eq.s32.totalorder %s35, 0
    %p308 = por %p306, %p307
    %p309 = scmp.ne.s32.totalorder %s297, %s298
    %p310 = scmp.eq.s32.totalorder %s36, 1
    %p311 = por %p309, %p310
    %p313 = scmp.ne.s32.totalorder %s298, %s312
    %p314 = scmp.eq.s32.totalorder %s36, 0
    %p315 = por %p313, %p314
    %s317 = sadd.s32 %s316, 1
    %p320 = scmp.eq.s32.totalorder %s30, 1
    %p321 = scmp.ne.s32.totalorder %s316, %s318
    %p322 = scmp.eq.s32.totalorder %s30, 0
    %p323 = por %p321, %p322
    %p324 = scmp.ne.s32.totalorder %s316, %s318
    %p325 = scmp.eq.s32.totalorder %s35, 1
    %p326 = por %p324, %p325
    %p327 = scmp.ne.s32.totalorder %s318, %s319
    %p328 = scmp.eq.s32.totalorder %s35, 0
    %p329 = por %p327, %p328
    %p330 = scmp.ne.s32.totalorder %s318, %s319
    %p331 = scmp.eq.s32.totalorder %s36, 1
    %p332 = por %p330, %p331
    %p334 = scmp.ne.s32.totalorder %s319, %s333
    %p335 = scmp.eq.s32.totalorder %s36, 0
    %p336 = por %p334, %p335
    %s338 = sadd.s32 %s337, 1
    %p341 = scmp.eq.s32.totalorder %s30, 1
    %p342 = scmp.ne.s32.totalorder %s337, %s339
    %p343 = scmp.eq.s32.totalorder %s30, 0
    %p344 = por %p342, %p343
    %p345 = scmp.ne.s32.totalorder %s337, %s339
    %p346 = scmp.eq.s32.totalorder %s35, 1
    %p347 = por %p345, %p346
    %p348 = scmp.ne.s32.totalorder %s339, %s340
    %p349 = scmp.eq.s32.totalorder %s35, 0
    %p350 = por %p348, %p349
    %p351 = scmp.ne.s32.totalorder %s339, %s340
    %p352 = scmp.eq.s32.totalorder %s36, 1
    %p353 = por %p351, %p352
    %p355 = scmp.ne.s32.totalorder %s340, %s354
    %p356 = scmp.eq.s32.totalorder %s36, 0
    %p357 = por %p355, %p356
    %s359 = sadd.s32 %s358, 1
    %p362 = scmp.eq.s32.totalorder %s30, 1
    %p363 = scmp.ne.s32.totalorder %s358, %s360
    %p364 = scmp.eq.s32.totalorder %s30, 0
    %p365 = por %p363, %p364
    %p366 = scmp.ne.s32.totalorder %s358, %s360
    %p367 = scmp.eq.s32.totalorder %s35, 1
    %p368 = por %p366, %p367
    %p369 = scmp.ne.s32.totalorder %s360, %s361
    %p370 = scmp.eq.s32.totalorder %s35, 0
    %p371 = por %p369, %p370
    %p372 = scmp.ne.s32.totalorder %s360, %s361
    %p373 = scmp.eq.s32.totalorder %s36, 1
    %p374 = por %p372, %p373
    %p376 = scmp.ne.s32.totalorder %s361, %s375
    %p377 = scmp.eq.s32.totalorder %s36, 0
    %p378 = por %p376, %p377
    %s380 = sadd.s32 %s379, 1
    %p383 = scmp.eq.s32.totalorder %s30, 1
    %p384 = scmp.ne.s32.totalorder %s379, %s381
    %p385 = scmp.eq.s32.totalorder %s30, 0
    %p386 = por %p384, %p385
    %p387 = scmp.ne.s32.totalorder %s379, %s381
    %p388 = scmp.eq.s32.totalorder %s35, 1
    %p389 = por %p387, %p388
    %p390 = scmp.ne.s32.totalorder %s381, %s382
    %p391 = scmp.eq.s32.totalorder %s35, 0
    %p392 = por %p390, %p391
    %p393 = scmp.ne.s32.totalorder %s381, %s382
    %p394 = scmp.eq.s32.totalorder %s36, 1
    %p395 = por %p393, %p394
    %p397 = scmp.ne.s32.totalorder %s382, %s396
    %p398 = scmp.eq.s32.totalorder %s36, 0
    %p399 = por %p397, %p398
    %s401 = sadd.s32 %s400, 1
    %p404 = scmp.eq.s32.totalorder %s30, 1
    %p405 = scmp.ne.s32.totalorder %s400, %s402
    %p406 = scmp.eq.s32.totalorder %s30, 0
    %p407 = por %p405, %p406
    %p408 = scmp.ne.s32.totalorder %s400, %s402
    %p409 = scmp.eq.s32.totalorder %s35, 1
    %p410 = por %p408, %p409
    %p411 = scmp.ne.s32.totalorder %s402, %s403
    %p412 = scmp.eq.s32.totalorder %s35, 0
    %p413 = por %p411, %p412
    %p414 = scmp.ne.s32.totalorder %s402, %s403
    %p415 = scmp.eq.s32.totalorder %s36, 1
    %p416 = por %p414, %p415
    %p418 = scmp.ne.s32.totalorder %s403, %s417
    %p419 = scmp.eq.s32.totalorder %s36, 0
    %p420 = por %p418, %p419
    %s422 = sadd.s32 %s421, 1
    %p425 = scmp.eq.s32.totalorder %s30, 1
    %p426 = scmp.ne.s32.totalorder %s421, %s423
    %p427 = scmp.eq.s32.totalorder %s30, 0
    %p428 = por %p426, %p427
    %p429 = scmp.ne.s32.totalorder %s421, %s423
    %p430 = scmp.eq.s32.totalorder %s35, 1
    %p431 = por %p429, %p430
    %p432 = scmp.ne.s32.totalorder %s423, %s424
    %p433 = scmp.eq.s32.totalorder %s35, 0
    %p434 = por %p432, %p433
    %p435 = scmp.ne.s32.totalorder %s423, %s424
    %p436 = scmp.eq.s32.totalorder %s36, 1
    %p437 = por %p435, %p436
    %p439 = scmp.ne.s32.totalorder %s424, %s438
    %p440 = scmp.eq.s32.totalorder %s36, 0
    %p441 = por %p439, %p440
    %s443 = sadd.s32 %s442, 1
    %p446 = scmp.eq.s32.totalorder %s30, 1
    %p447 = scmp.ne.s32.totalorder %s442, %s444
    %p448 = scmp.eq.s32.totalorder %s30, 0
    %p449 = por %p447, %p448
    %p450 = scmp.ne.s32.totalorder %s442, %s444
    %p451 = scmp.eq.s32.totalorder %s35, 1
    %p452 = por %p450, %p451
    %p453 = scmp.ne.s32.totalorder %s444, %s445
    %p454 = scmp.eq.s32.totalorder %s35, 0
    %p455 = por %p453, %p454
    %p456 = scmp.ne.s32.totalorder %s444, %s445
    %p457 = scmp.eq.s32.totalorder %s36, 1
    %p458 = por %p456, %p457
    %p460 = scmp.ne.s32.totalorder %s445, %s459
    %p461 = scmp.eq.s32.totalorder %s36, 0
    %p462 = por %p460, %p461
    %s464 = sadd.s32 %s463, 1
    %p467 = scmp.eq.s32.totalorder %s30, 1
    %p468 = scmp.ne.s32.totalorder %s463, %s465
    %p469 = scmp.eq.s32.totalorder %s30, 0
    %p470 = por %p468, %p469
    %p471 = scmp.ne.s32.totalorder %s463, %s465
    %p472 = scmp.eq.s32.totalorder %s35, 1
    %p473 = por %p471, %p472
    %p474 = scmp.ne.s32.totalorder %s465, %s466
    %p475 = scmp.eq.s32.totalorder %s35, 0
    %p476 = por %p474, %p475
    %p477 = scmp.ne.s32.totalorder %s465, %s466
    %p478 = scmp.eq.s32.totalorder %s36, 1
    %p479 = por %p477, %p478
    %p481 = scmp.ne.s32.totalorder %s466, %s480
    %p482 = scmp.eq.s32.totalorder %s36, 0
    %p483 = por %p481, %p482
    %s485 = sadd.s32 %s484, 1
    %p488 = scmp.eq.s32.totalorder %s30, 1
    %p489 = scmp.ne.s32.totalorder %s484, %s486
    %p490 = scmp.eq.s32.totalorder %s30, 0
    %p491 = por %p489, %p490
    %p492 = scmp.ne.s32.totalorder %s484, %s486
    %p493 = scmp.eq.s32.totalorder %s35, 1
    %p494 = por %p492, %p493
    %p495 = scmp.ne.s32.totalorder %s486, %s487
    %p496 = scmp.eq.s32.totalorder %s35, 0
    %p497 = por %p495, %p496
    %p498 = scmp.ne.s32.totalorder %s486, %s487
    %p499 = scmp.eq.s32.totalorder %s36, 1
    %p500 = por %p498, %p499
    %p502 = scmp.ne.s32.totalorder %s487, %s501
    %p503 = scmp.eq.s32.totalorder %s36, 0
    %p504 = por %p502, %p503
    %s506 = sadd.s32 %s505, 1
    %p509 = scmp.eq.s32.totalorder %s30, 1
    %p510 = scmp.ne.s32.totalorder %s505, %s507
    %p511 = scmp.eq.s32.totalorder %s30, 0
    %p512 = por %p510, %p511
    %p513 = scmp.ne.s32.totalorder %s505, %s507
    %p514 = scmp.eq.s32.totalorder %s35, 1
    %p515 = por %p513, %p514
    %p516 = scmp.ne.s32.totalorder %s507, %s508
    %p517 = scmp.eq.s32.totalorder %s35, 0
    %p518 = por %p516, %p517
    %p519 = scmp.ne.s32.totalorder %s507, %s508
    %p520 = scmp.eq.s32.totalorder %s36, 1
    %p521 = por %p519, %p520
    %p523 = scmp.ne.s32.totalorder %s508, %s522
    %p524 = scmp.eq.s32.totalorder %s36, 0
    %p525 = por %p523, %p524
    %s527 = sadd.s32 %s526, 1
    %p530 = scmp.eq.s32.totalorder %s30, 1
    %p531 = scmp.ne.s32.totalorder %s526, %s528
    %p532 = scmp.eq.s32.totalorder %s30, 0
    %p533 = por %p531, %p532
    %p534 = scmp.ne.s32.totalorder %s526, %s528
    %p535 = scmp.eq.s32.totalorder %s35, 1
    %p536 = por %p534, %p535
    %p537 = scmp.ne.s32.totalorder %s528, %s529
    %p538 = scmp.eq.s32.totalorder %s35, 0
    %p539 = por %p537, %p538
    %p540 = scmp.ne.s32.totalorder %s528, %s529
    %p541 = scmp.eq.s32.totalorder %s36, 1
    %p542 = por %p540, %p541
    %p544 = scmp.ne.s32.totalorder %s529, %s543
    %p545 = scmp.eq.s32.totalorder %s36, 0
    %p546 = por %p544, %p545
    %s547 = ssub.s32 %s30, %s37
    %p548 = scmp.eq.s32.totalorder %s547, 0
    %s550 = sadd.s32 %s549, 1
    %s551 = scalar_select %p548, %s549, %s550
    %p554 = pneg %p548
    %p555 = scmp.eq.s32.totalorder %s30, 1
    %p556 = por %p554, %p555
    %p557 = scmp.ne.s32.totalorder %s549, %s552
    %p558 = scmp.eq.s32.totalorder %s30, 0
    %p559 = por %p557, %p558
    %p560 = scmp.ne.s32.totalorder %s549, %s552
    %p561 = scmp.eq.s32.totalorder %s35, 1
    %p562 = por %p560, %p561
    %p563 = scmp.ne.s32.totalorder %s552, %s553
    %p564 = scmp.eq.s32.totalorder %s35, 0
    %p565 = por %p563, %p564
    %p566 = scmp.ne.s32.totalorder %s552, %s553
    %p567 = scmp.eq.s32.totalorder %s36, 1
    %p568 = por %p566, %p567
    %p570 = scmp.ne.s32.totalorder %s553, %s569
    %p571 = scmp.eq.s32.totalorder %s36, 0
    %p572 = por %p570, %p571
    %p573 = scmp.le.s32.totalorder 1, %s30
    %p574 = scmp.lt.s32.totalorder %s30, 3
    %p575 = pnand %p573, %p574
    %p576 = pneg %p575
    // Predicated region
    $region9: #{tpu_custom_call.1} parent=5 // pred_check
      _
    $region10: #{tpu_custom_call.1} parent=5 // pred_check_branch
      %578 = sbr.rel (%p575) target = $region12
    $region11: #{tpu_custom_call.1} parent=5 // pred_region
      %s579 = ssub.s32 %s30, 1
      // Predicated region
      $region13: #{tpu_custom_call.1} parent=11 // pred_check
        %p580 = pneg %p77
      $region14: #{tpu_custom_call.1} parent=11 // pred_check_branch
        %582 = sbr.rel (%p580) target = $region16
      $region15: #{tpu_custom_call.1} parent=11 // pred_region
        _
      $region16: #{tpu_custom_call.1} parent=11 // pred_fallthru
        _
      // Predicated region
      $region17: #{tpu_custom_call.1} parent=11 // pred_check
        %p583 = pneg %p98
      $region18: #{tpu_custom_call.1} parent=11 // pred_check_branch
        %585 = sbr.rel (%p583) target = $region20
      $region19: #{tpu_custom_call.1} parent=11 // pred_region
        _
      $region20: #{tpu_custom_call.1} parent=11 // pred_fallthru
        _
      // Predicated region
      $region21: #{tpu_custom_call.1} parent=11 // pred_check
        %p586 = pneg %p119
      $region22: #{tpu_custom_call.1} parent=11 // pred_check_branch
        %588 = sbr.rel (%p586) target = $region24
      $region23: #{tpu_custom_call.1} parent=11 // pred_region
        _
      $region24: #{tpu_custom_call.1} parent=11 // pred_fallthru
        _
      // Predicated region
      $region25: #{tpu_custom_call.1} parent=11 // pred_check
        %p589 = pneg %p140
      $region26: #{tpu_custom_call.1} parent=11 // pred_check_branch
        %591 = sbr.rel (%p589) target = $region28
      $region27: #{tpu_custom_call.1} parent=11 // pred_region
        _
      $region28: #{tpu_custom_call.1} parent=11 // pred_fallthru
        _
      // Predicated region
      $region29: #{tpu_custom_call.1} parent=11 // pred_check
        %p592 = pneg %p161
      $region30: #{tpu_custom_call.1} parent=11 // pred_check_branch
        %594 = sbr.rel (%p592) target = $region32
      $region31: #{tpu_custom_call.1} parent=11 // pred_region
        _
      $region32: #{tpu_custom_call.1} parent=11 // pred_fallthru
        _
      // Predicated region
      $region33: #{tpu_custom_call.1} parent=11 // pred_check
        %p595 = pneg %p182
      $region34: #{tpu_custom_call.1} parent=11 // pred_check_branch
        %597 = sbr.rel (%p595) target = $region36
      $region35: #{tpu_custom_call.1} parent=11 // pred_region
        _
      $region36: #{tpu_custom_call.1} parent=11 // pred_fallthru
        _
      // Predicated region
      $region37: #{tpu_custom_call.1} parent=11 // pred_check
        %p598 = pneg %p203
      $region38: #{tpu_custom_call.1} parent=11 // pred_check_branch
        %600 = sbr.rel (%p598) target = $region40
      $region39: #{tpu_custom_call.1} parent=11 // pred_region
        _
      $region40: #{tpu_custom_call.1} parent=11 // pred_fallthru
        _
      // Predicated region
      $region41: #{tpu_custom_call.1} parent=11 // pred_check
        %p601 = pneg %p224
      $region42: #{tpu_custom_call.1} parent=11 // pred_check_branch
        %603 = sbr.rel (%p601) target = $region44
      $region43: #{tpu_custom_call.1} parent=11 // pred_region
        _
      $region44: #{tpu_custom_call.1} parent=11 // pred_fallthru
        _
      // Predicated region
      $region45: #{tpu_custom_call.1} parent=11 // pred_check
        %p604 = pneg %p245
      $region46: #{tpu_custom_call.1} parent=11 // pred_check_branch
        %606 = sbr.rel (%p604) target = $region48
      $region47: #{tpu_custom_call.1} parent=11 // pred_region
        _
      $region48: #{tpu_custom_call.1} parent=11 // pred_fallthru
        _
      // Predicated region
      $region49: #{tpu_custom_call.1} parent=11 // pred_check
        %p607 = pneg %p266
      $region50: #{tpu_custom_call.1} parent=11 // pred_check_branch
        %609 = sbr.rel (%p607) target = $region52
      $region51: #{tpu_custom_call.1} parent=11 // pred_region
        _
      $region52: #{tpu_custom_call.1} parent=11 // pred_fallthru
        _
      // Predicated region
      $region53: #{tpu_custom_call.1} parent=11 // pred_check
        %p610 = pneg %p287
      $region54: #{tpu_custom_call.1} parent=11 // pred_check_branch
        %612 = sbr.rel (%p610) target = $region56
      $region55: #{tpu_custom_call.1} parent=11 // pred_region
        _
      $region56: #{tpu_custom_call.1} parent=11 // pred_fallthru
        _
      // Predicated region
      $region57: #{tpu_custom_call.1} parent=11 // pred_check
        %p613 = pneg %p308
      $region58: #{tpu_custom_call.1} parent=11 // pred_check_branch
        %615 = sbr.rel (%p613) target = $region60
      $region59: #{tpu_custom_call.1} parent=11 // pred_region
        _
      $region60: #{tpu_custom_call.1} parent=11 // pred_fallthru
        _
      // Predicated region
      $region61: #{tpu_custom_call.1} parent=11 // pred_check
        %p616 = pneg %p329
      $region62: #{tpu_custom_call.1} parent=11 // pred_check_branch
        %618 = sbr.rel (%p616) target = $region64
      $region63: #{tpu_custom_call.1} parent=11 // pred_region
        _
      $region64: #{tpu_custom_call.1} parent=11 // pred_fallthru
        _
      // Predicated region
      $region65: #{tpu_custom_call.1} parent=11 // pred_check
        %p619 = pneg %p350
      $region66: #{tpu_custom_call.1} parent=11 // pred_check_branch
        %621 = sbr.rel (%p619) target = $region68
      $region67: #{tpu_custom_call.1} parent=11 // pred_region
        _
      $region68: #{tpu_custom_call.1} parent=11 // pred_fallthru
        _
      // Predicated region
      $region69: #{tpu_custom_call.1} parent=11 // pred_check
        %p622 = pneg %p371
      $region70: #{tpu_custom_call.1} parent=11 // pred_check_branch
        %624 = sbr.rel (%p622) target = $region72
      $region71: #{tpu_custom_call.1} parent=11 // pred_region
        _
      $region72: #{tpu_custom_call.1} parent=11 // pred_fallthru
        _
      // Predicated region
      $region73: #{tpu_custom_call.1} parent=11 // pred_check
        %p625 = pneg %p392
      $region74: #{tpu_custom_call.1} parent=11 // pred_check_branch
        %627 = sbr.rel (%p625) target = $region76
      $region75: #{tpu_custom_call.1} parent=11 // pred_region
        _
      $region76: #{tpu_custom_call.1} parent=11 // pred_fallthru
        _
      // Predicated region
      $region77: #{tpu_custom_call.1} parent=11 // pred_check
        %p628 = pneg %p413
      $region78: #{tpu_custom_call.1} parent=11 // pred_check_branch
        %630 = sbr.rel (%p628) target = $region80
      $region79: #{tpu_custom_call.1} parent=11 // pred_region
        _
      $region80: #{tpu_custom_call.1} parent=11 // pred_fallthru
        _
      // Predicated region
      $region81: #{tpu_custom_call.1} parent=11 // pred_check
        %p631 = pneg %p434
      $region82: #{tpu_custom_call.1} parent=11 // pred_check_branch
        %633 = sbr.rel (%p631) target = $region84
      $region83: #{tpu_custom_call.1} parent=11 // pred_region
        _
      $region84: #{tpu_custom_call.1} parent=11 // pred_fallthru
        _
      // Predicated region
      $region85: #{tpu_custom_call.1} parent=11 // pred_check
        %p634 = pneg %p455
      $region86: #{tpu_custom_call.1} parent=11 // pred_check_branch
        %636 = sbr.rel (%p634) target = $region88
      $region87: #{tpu_custom_call.1} parent=11 // pred_region
        _
      $region88: #{tpu_custom_call.1} parent=11 // pred_fallthru
        _
      // Predicated region
      $region89: #{tpu_custom_call.1} parent=11 // pred_check
        %p637 = pneg %p476
      $region90: #{tpu_custom_call.1} parent=11 // pred_check_branch
        %639 = sbr.rel (%p637) target = $region92
      $region91: #{tpu_custom_call.1} parent=11 // pred_region
        _
      $region92: #{tpu_custom_call.1} parent=11 // pred_fallthru
        _
      // Predicated region
      $region93: #{tpu_custom_call.1} parent=11 // pred_check
        %p640 = pneg %p497
      $region94: #{tpu_custom_call.1} parent=11 // pred_check_branch
        %642 = sbr.rel (%p640) target = $region96
      $region95: #{tpu_custom_call.1} parent=11 // pred_region
        _
      $region96: #{tpu_custom_call.1} parent=11 // pred_fallthru
        _
      // Predicated region
      $region97: #{tpu_custom_call.1} parent=11 // pred_check
        %p643 = pneg %p518
      $region98: #{tpu_custom_call.1} parent=11 // pred_check_branch
        %645 = sbr.rel (%p643) target = $region100
      $region99: #{tpu_custom_call.1} parent=11 // pred_region
        _
      $region100: #{tpu_custom_call.1} parent=11 // pred_fallthru
        _
      // Predicated region
      $region101: #{tpu_custom_call.1} parent=11 // pred_check
        %p646 = pneg %p539
      $region102: #{tpu_custom_call.1} parent=11 // pred_check_branch
        %648 = sbr.rel (%p646) target = $region104
      $region103: #{tpu_custom_call.1} parent=11 // pred_region
        _
      $region104: #{tpu_custom_call.1} parent=11 // pred_fallthru
        _
    $region12: #{tpu_custom_call.1} parent=5 // pred_fallthru
      _
    %p649 = scmp.lt.s32.totalorder %s30, 2
    // Predicated region
    $region105: #{tpu_custom_call.1} parent=5 // pred_check
      %p650 = pneg %p649
    $region106: #{tpu_custom_call.1} parent=5 // pred_check_branch
      %652 = sbr.rel (%p650) target = $region108
    $region107: #{tpu_custom_call.1} parent=5 // pred_region
      // Predicated region
      $region109: #{tpu_custom_call.1} parent=107 // pred_check
        %p653 = pneg %p50
      $region110: #{tpu_custom_call.1} parent=107 // pred_check_branch
        %655 = sbr.rel (%p653) target = $region112
      $region111: #{tpu_custom_call.1} parent=107 // pred_region
        %p656 = scmp.lt.s32.totalorder %s30, 1
        %s657 = scalar_select %p656, %s30, 1
        %s658 = smul.addr %s657, 2
        %s659 = smul.addr %s658, 8
        %s660 = scalar_lea.vmem %s0, %s659
      $region112: #{tpu_custom_call.1} parent=107 // pred_fallthru
        _
    $region108: #{tpu_custom_call.1} parent=5 // pred_fallthru
      _
    %p661 = scmp.le.s32.totalorder 1, %s30
    %p662 = scmp.lt.s32.totalorder %s30, 3
    %p663 = pnand %p661, %p662
    %p664 = pneg %p663
    // Predicated region
    $region113: #{tpu_custom_call.1} parent=5 // pred_check
      _
    $region114: #{tpu_custom_call.1} parent=5 // pred_check_branch
      %666 = sbr.rel (%p663) target = $region116
    $region115: #{tpu_custom_call.1} parent=5 // pred_region
      %s667 = ssub.s32 %s30, 1
      %p668 = scmp.lt.s32.totalorder %s35, 1
      %s669 = scalar_select %p668, %s35, 1
      %s670 = smul.addr %s669, 2
      %s671 = smul.addr %s670, 8
      %s672 = scalar_lea.vmem %s0, %s671
      %p673 = pneg %p56
      %p674 = pneg %p53
      %p675 = pneg %p77
      %p676 = pneg %p74
      %p677 = pneg %p98
      %p678 = pneg %p95
      %p679 = pneg %p119
      %p680 = pneg %p116
      %p681 = pneg %p140
      %p682 = pneg %p137
      %p683 = pneg %p161
      %p684 = pneg %p158
      %p685 = pneg %p182
      %p686 = pneg %p179
      %p687 = pneg %p203
      %p688 = pneg %p200
      %p689 = pneg %p224
      %p690 = pneg %p221
      %p691 = pneg %p245
      %p692 = pneg %p242
      %p693 = pneg %p266
      %p694 = pneg %p263
      %p695 = pneg %p287
      %p696 = pneg %p284
      %p697 = pneg %p308
      %p698 = pneg %p305
      %p699 = pneg %p329
      %p700 = pneg %p326
      %p701 = pneg %p350
      %p702 = pneg %p347
      %p703 = pneg %p371
      %p704 = pneg %p368
      %p705 = pneg %p392
      %p706 = pneg %p389
      %p707 = pneg %p413
      %p708 = pneg %p410
      %p709 = pneg %p434
      %p710 = pneg %p431
      %p711 = pneg %p455
      %p712 = pneg %p452
      %p713 = pneg %p476
      %p714 = pneg %p473
      %p715 = pneg %p497
      %p716 = pneg %p494
      %p717 = pneg %p518
      %p718 = pneg %p515
      %p719 = pneg %p539
      %p720 = pneg %p536
      %p721 = pneg %p565
      %p722 = pneg %p562
      %p723 = scmp.lt.s32.totalorder %s35, 1
      %s724 = scalar_select %p723, %s35, 1
      %s725 = smul.addr %s724, 2
      %s726 = smul.addr %s725, 4
      %s727 = scalar_lea.vmem %s24, %s726
      %p728 = scmp.lt.s32.totalorder %s35, 1
      %s729 = scalar_select %p728, %s35, 1
      %s730 = smul.addr %s729, 2
      %s731 = smul.addr %s730, 8
      %s732 = scalar_lea.vmem %s0, %s731
      %p733 = scmp.lt.s32.totalorder %s35, 1
      %s734 = scalar_select %p733, %s35, 1
      %s735 = smul.addr %s734, 2
      %s736 = smul.addr %s735, 4
      %s737 = scalar_lea.vmem %s24, %s736
      %v738 = vld [vmem:[%s1] sm:$0xff]
      %v739 = vld [vmem:[%s1 + $0x8] sm:$0xff]
      %v740 = vld [vmem:[%s1 + $0x10] sm:$0x1]
      %v741 = vld [vmem:[%s1 + $0x18] sm:$0x1]
      %v742 = vld [vmem:[%s732] sm:$0xff]
      %v743 = vld [vmem:[%s732 + $0x8] sm:$0xff]
      %v744 = vld [vmem:[%s2] sm:$0xff]
      %v745 = vld [vmem:[%s2 + $0x8] sm:$0xff]
      %v746 = vld [vmem:[%s3] sm:$0xff]
      %v747 = vld [vmem:[%s3 + $0x8] sm:$0xff]
      %748 = vrot.lane.b32.xlu0 %v742, 17
      %v749 = vpop.permute.xlu0 %748
      %750 = vrot.lane.b32.xlu0 %v743, 17
      %v751 = vpop.permute.xlu0 %750
      %v752 = vlaneseq
      %v753 = vand.u32 %v752, 127
      %vm754 = vcmp.lt.s32.totalorder %v753, 17
      %v755 = vsel %vm754, %v749, %v751
      %v756 = vsel %vm754, %v751, %v749
      %v757 = vperm.slane %v738, 0
      %v758 = vperm.slane %v739, 0
      %v759 = vmul.f32 %v756, %v757
      %v760 = vmul.f32 %v755, %v758
      %761 = vrot.lane.b32.xlu0 %v742, 16
      %v762 = vpop.permute.xlu0 %761
      %763 = vrot.lane.b32.xlu0 %v743, 16
      %v764 = vpop.permute.xlu0 %763
      %vm765 = vcmp.lt.s32.totalorder %v753, 16
      %v766 = vsel %vm765, %v762, %v764
      %v767 = vsel %vm765, %v764, %v762
      %v768 = vperm.slane %v738, 1
      %v769 = vperm.slane %v739, 1
      %v770 = vmul.f32 %v767, %v768
      %v771 = vmul.f32 %v766, %v769
      %772 = vrot.lane.b32.xlu0 %v742, 15
      %v773 = vpop.permute.xlu0 %772
      %774 = vrot.lane.b32.xlu0 %v743, 15
      %v775 = vpop.permute.xlu0 %774
      %vm776 = vcmp.lt.s32.totalorder %v753, 15
      %v777 = vsel %vm776, %v773, %v775
      %v778 = vsel %vm776, %v775, %v773
      %v779 = vperm.slane %v738, 2
      %v780 = vperm.slane %v739, 2
      %v781 = vmul.f32 %v778, %v779
      %v782 = vmul.f32 %v777, %v780
      %783 = vrot.lane.b32.xlu0 %v742, 1
      %v784 = vpop.permute.xlu0 %783
      %785 = vrot.lane.b32.xlu0 %v743, 1
      %v786 = vpop.permute.xlu0 %785
      %vm787 = vcmp.lt.s32.totalorder %v753, 1
      %v788 = vsel %vm787, %v784, %v786
      %v789 = vsel %vm787, %v786, %v784
      %v790 = vperm.slane %v738, 3
      %v791 = vperm.slane %v739, 3
      %v792 = vmul.f32 %v789, %v790
      %v793 = vmul.f32 %v788, %v791
      %794 = vrot.lane.b32.xlu0 %v742, 127
      %v795 = vpop.permute.xlu0 %794
      %796 = vrot.lane.b32.xlu0 %v743, 127
      %v797 = vpop.permute.xlu0 %796
      %vm798 = vcmp.lt.s32.totalorder %v753, 127
      %v799 = vsel %vm798, %v795, %v797
      %v800 = vsel %vm798, %v797, %v795
      %v801 = vperm.slane %v738, 5
      %v802 = vperm.slane %v739, 5
      %v803 = vmul.f32 %v799, %v801
      %v804 = vmul.f32 %v800, %v802
      %805 = vrot.lane.b32.xlu0 %v742, 113
      %v806 = vpop.permute.xlu0 %805
      %807 = vrot.lane.b32.xlu0 %v743, 113
      %v808 = vpop.permute.xlu0 %807
      %vm809 = vcmp.lt.s32.totalorder %v753, 113
      %v810 = vsel %vm809, %v806, %v808
      %v811 = vsel %vm809, %v808, %v806
      %v812 = vperm.slane %v738, 6
      %v813 = vperm.slane %v739, 6
      %v814 = vmul.f32 %v810, %v812
      %v815 = vmul.f32 %v811, %v813
      %816 = vrot.lane.b32.xlu0 %v742, 112
      %v817 = vpop.permute.xlu0 %816
      %818 = vrot.lane.b32.xlu0 %v743, 112
      %v819 = vpop.permute.xlu0 %818
      %vm820 = vcmp.lt.s32.totalorder %v753, 112
      %v821 = vsel %vm820, %v817, %v819
      %v822 = vsel %vm820, %v819, %v817
      %v823 = vperm.slane %v738, 7
      %v824 = vperm.slane %v739, 7
      %v825 = vmul.f32 %v821, %v823
      %v826 = vmul.f32 %v822, %v824
      %827 = vrot.lane.b32.xlu0 %v742, 111
      %v828 = vpop.permute.xlu0 %827
      %829 = vrot.lane.b32.xlu0 %v743, 111
      %v830 = vpop.permute.xlu0 %829
      %vm831 = vcmp.lt.s32.totalorder %v753, 111
      %v832 = vsel %vm831, %v828, %v830
      %v833 = vsel %vm831, %v830, %v828
      %v834 = vperm.slane %v740, 0
      %v835 = vperm.slane %v741, 0
      %v836 = vmul.f32 %v832, %v834
      %v837 = vmul.f32 %v833, %v835
      %839 = vset.pattern.permute.xlu0 0
      %840 = vperm.xlu0 %839, %v746
      %v841 = vpop.permute.xlu0 %840
      %844 = vset.pattern.permute.xlu0 0
      %845 = vperm.xlu0 %844, %v747
      %v846 = vpop.permute.xlu0 %845
      %vm848 = vcmask 588800
      %v850 = vsel %vm848, %v744, 0
      %v853 = vsel %vm848, %v745, 0
      %855 = vmatpush.msra.mxu0 0.0
      %856 = vmatpush.msra.mxu0 0.0
      %857 = vmatpush.msra.mxu0 0.0
      %858 = vmatpush.msra.mxu0 0.0
      %859 = vmatpush.msra.mxu0 0.0
      %860 = vmatpush.msra.mxu0 0.0
      %861 = vmatpush.msra.mxu0 0.0
      %862 = vmatpush.msra.mxu0 %v836
      %863 = vmatpush.msra.mxu0 %v825
      %864 = vmatpush.msra.mxu0 %v814
      %865 = vmatpush.msra.mxu0 %v803
      %866 = vmatpush.msra.mxu0 %v742
      %867 = vmatpush.msra.mxu0 %v792
      %868 = vmatpush.msra.mxu0 %v781
      %869 = vmatpush.msra.mxu0 %v770
      %870 = vmatpush.msra.mxu0 %v759
      %871 = vmatmul.f32.gmra.mxu0 %v850
      %v872 = vpop.f32.mrf.mxu0
      %v873 = vadd.f32 %v841, %v872
      %874 = vmatmul.f32.gmra.mxu0 %v853
      %v875 = vpop.f32.mrf.mxu0
      %v876 = vadd.f32 %v846, %v875
      %877 = vdwg.mxu0
      %878 = vmatpush.msra.mxu0 0.0
      %879 = vmatpush.msra.mxu0 0.0
      %880 = vmatpush.msra.mxu0 0.0
      %881 = vmatpush.msra.mxu0 0.0
      %882 = vmatpush.msra.mxu0 0.0
      %883 = vmatpush.msra.mxu0 0.0
      %884 = vmatpush.msra.mxu0 0.0
      %885 = vmatpush.msra.mxu0 %v837
      %886 = vmatpush.msra.mxu0 %v826
      %887 = vmatpush.msra.mxu0 %v815
      %888 = vmatpush.msra.mxu0 %v804
      %889 = vmatpush.msra.mxu0 %v743
      %890 = vmatpush.msra.mxu0 %v793
      %891 = vmatpush.msra.mxu0 %v782
      %892 = vmatpush.msra.mxu0 %v771
      %893 = vmatpush.msra.mxu0 %v760
      %894 = vmatmul.f32.gmra.mxu0 %v850
      %v895 = vpop.f32.mrf.mxu0
      %v896 = vadd.f32 %v841, %v895
      %897 = vmatmul.f32.gmra.mxu0 %v853
      %v898 = vpop.f32.mrf.mxu0
      %v899 = vadd.f32 %v846, %v898
      %900 = vdwg.mxu0
      %v901 = vld [vmem:[%s4] sm:$0xff]
      %v902 = vld [vmem:[%s4 + $0x8] sm:$0xff]
      %v903 = vld [vmem:[%s5] sm:$0xff]
      %v904 = vld [vmem:[%s5 + $0x8] sm:$0xff]
      %v905 = vadd.f32 %v873, %v876
      %v906 = vrot.slane %v905, 4
      %v907 = vadd.f32 %v905, %v906
      %v908 = vrot.slane %v907, 2
      %v909 = vadd.f32 %v907, %v908
      %v910 = vrot.slane %v909, 1
      %v911 = vadd.f32 %v909, %v910
      %v912 = vadd.f32 %v896, %v899
      %v913 = vrot.slane %v912, 4
      %v914 = vadd.f32 %v912, %v913
      %v915 = vrot.slane %v914, 2
      %v916 = vadd.f32 %v914, %v915
      %v917 = vrot.slane %v916, 1
      %v918 = vadd.f32 %v916, %v917
      %v919 = vrcp.pop 16.0
      %v920 = vmul.f32 16.0, %v919
      %v921 = vsub.f32 1.0, %v920
      %v922 = vmul.f32 %v919, %v921
      %v923 = vadd.f32 %v919, %v922
      %vm924 = vweird.f32 %v919
      %v925 = vsel %vm924, %v919, %v923
      %v926 = vmul.f32 %v911, %v925
      %v927 = vmul.f32 %v918, %v925
      %v928 = vsub.f32 %v873, %v926
      %v929 = vsub.f32 %v896, %v927
      %v930 = vsub.f32 %v876, %v926
      %v931 = vsub.f32 %v899, %v927
      %v932 = vmul.f32 %v928, %v928
      %v933 = vmul.f32 %v929, %v929
      %v934 = vmul.f32 %v930, %v930
      %v935 = vmul.f32 %v931, %v931
      %v936 = vadd.f32 %v932, %v934
      %v937 = vrot.slane %v936, 4
      %v938 = vadd.f32 %v936, %v937
      %v939 = vrot.slane %v938, 2
      %v940 = vadd.f32 %v938, %v939
      %v941 = vrot.slane %v940, 1
      %v942 = vadd.f32 %v940, %v941
      %v943 = vadd.f32 %v933, %v935
      %v944 = vrot.slane %v943, 4
      %v945 = vadd.f32 %v943, %v944
      %v946 = vrot.slane %v945, 2
      %v947 = vadd.f32 %v945, %v946
      %v948 = vrot.slane %v947, 1
      %v949 = vadd.f32 %v947, %v948
      %v950 = vmul.f32 %v942, %v925
      %v951 = vmul.f32 %v949, %v925
      %v952 = vadd.f32 %v950, 1e-06
      %v953 = vadd.f32 %v951, 1e-06
      %v954 = vrsqrt.pop %v952
      %v955 = vmul.f32 %v954, %v952
      %v956 = vmul.f32 %v955, %v954
      %v957 = vmul.f32 0.5, %v956
      %v958 = vsub.f32 1.5, %v957
      %v959 = vmul.f32 %v954, %v958
      %v960 = vmul.f32 %v952, %v959
      %vm961 = vcmp.eq.f32.partialorder %v952, inf
      %v962 = vsel %vm961, %v952, %v960
      %vm963 = vcmp.eq.f32.partialorder %v952, 0.0
      %v964 = vand.u32 %v952, 2147483648
      %v965 = vsel %vm963, %v964, %v962
      %v966 = vrsqrt.pop %v953
      %v967 = vmul.f32 %v966, %v953
      %v968 = vmul.f32 %v967, %v966
      %v969 = vmul.f32 0.5, %v968
      %v970 = vsub.f32 1.5, %v969
      %v971 = vmul.f32 %v966, %v970
      %v972 = vmul.f32 %v953, %v971
      %vm973 = vcmp.eq.f32.partialorder %v953, inf
      %v974 = vsel %vm973, %v953, %v972
      %vm975 = vcmp.eq.f32.partialorder %v953, 0.0
      %v976 = vand.u32 %v953, 2147483648
      %v977 = vsel %vm975, %v976, %v974
      %v978 = vrcp.pop %v965
      %v979 = vmul.f32 %v965, %v978
      %v980 = vsub.f32 1.0, %v979
      %v981 = vmul.f32 %v978, %v980
      %v982 = vadd.f32 %v978, %v981
      %vm983 = vweird.f32 %v965
      %vm984 = vweird.f32 %v978
      %vm985 = vmor %vm983, %vm984
      %v986 = vsel %vm985, %v978, %v982
      %v987 = vand.u32 2147483647, %v965
      %vm988 = vcmp.eq.f32.partialorder %v987, 8.507059e+37
      %v989 = vand.u32 %v965, 2147483648
      %v990 = vor.u32 1.1754944e-38, %v989
      %v991 = vsel %vm988, %v990, %v986
      %v992 = vmul.f32 %v928, %v991
      %v993 = vrcp.pop %v977
      %v994 = vmul.f32 %v977, %v993
      %v995 = vsub.f32 1.0, %v994
      %v996 = vmul.f32 %v993, %v995
      %v997 = vadd.f32 %v993, %v996
      %vm998 = vweird.f32 %v977
      %vm999 = vweird.f32 %v993
      %vm1000 = vmor %vm998, %vm999
      %v1001 = vsel %vm1000, %v993, %v997
      %v1002 = vand.u32 2147483647, %v977
      %vm1003 = vcmp.eq.f32.partialorder %v1002, 8.507059e+37
      %v1004 = vand.u32 %v977, 2147483648
      %v1005 = vor.u32 1.1754944e-38, %v1004
      %v1006 = vsel %vm1003, %v1005, %v1001
      %v1007 = vmul.f32 %v929, %v1006
      %v1008 = vmul.f32 %v930, %v991
      %v1009 = vmul.f32 %v931, %v1006
      %1011 = vset.pattern.permute.xlu0 0
      %1012 = vperm.xlu0 %1011, %v901
      %v1013 = vpop.permute.xlu0 %1012
      %1016 = vset.pattern.permute.xlu0 0
      %1017 = vperm.xlu0 %1016, %v902
      %v1018 = vpop.permute.xlu0 %1017
      %v1020 = vmul.f32 %v1013, %v992
      %v1021 = vmul.f32 %v1013, %v1007
      %v1022 = vmul.f32 %v1018, %v1008
      %v1023 = vmul.f32 %v1018, %v1009
      %1025 = vset.pattern.permute.xlu0 0
      %1026 = vperm.xlu0 %1025, %v903
      %v1027 = vpop.permute.xlu0 %1026
      %1030 = vset.pattern.permute.xlu0 0
      %1031 = vperm.xlu0 %1030, %v904
      %v1032 = vpop.permute.xlu0 %1031
      %v1034 = vadd.f32 %v1020, %v1027
      %v1035 = vadd.f32 %v1021, %v1027
      %v1036 = vadd.f32 %v1022, %v1032
      %v1037 = vadd.f32 %v1023, %v1032
      %v1038 = vld [vmem:[%s6] sm:$0xff]
      %v1039 = vld [vmem:[%s6 + $0x8] sm:$0xff]
      %v1040 = vld [vmem:[%s6 + $0x10] sm:$0xff]
      %v1041 = vld [vmem:[%s6 + $0x18] sm:$0xff]
      %v1042 = vld [vmem:[%s7] sm:$0xff]
      %v1043 = vld [vmem:[%s7 + $0x8] sm:$0xff]
      %v1044 = vld [vmem:[%s7 + $0x10] sm:$0xff]
      %v1045 = vld [vmem:[%s7 + $0x18] sm:$0xff]
      %1047 = vset.pattern.permute.xlu0 0
      %1048 = vperm.xlu0 %1047, %v1042
      %v1049 = vpop.permute.xlu0 %1048
      %1052 = vset.pattern.permute.xlu0 0
      %1053 = vperm.xlu0 %1052, %v1043
      %v1054 = vpop.permute.xlu0 %1053
      %1057 = vset.pattern.permute.xlu0 0
      %1058 = vperm.xlu0 %1057, %v1044
      %v1059 = vpop.permute.xlu0 %1058
      %1062 = vset.pattern.permute.xlu0 0
      %1063 = vperm.xlu0 %1062, %v1045
      %v1064 = vpop.permute.xlu0 %1063
      %vm1066 = vcmask 130048
      %v1068 = vsel %vm1066, %v1038, 0
      %v1071 = vsel %vm1066, %v1039, 0
      %v1074 = vsel %vm1066, %v1040, 0
      %v1077 = vsel %vm1066, %v1041, 0
      %1079 = vmatpush.msra.mxu0 0.0
      %1080 = vmatpush.msra.mxu0 0.0
      %1081 = vmatpush.msra.mxu0 0.0
      %1082 = vmatpush.msra.mxu0 0.0
      %1083 = vmatpush.msra.mxu0 0.0
      %1084 = vmatpush.msra.mxu0 0.0
      %1085 = vmatpush.msra.mxu0 0.0
      %1086 = vmatpush.msra.mxu0 0.0
      %1087 = vmatpush.msra.mxu0 0.0
      %1088 = vmatpush.msra.mxu0 0.0
      %1089 = vmatpush.msra.mxu0 0.0
      %1090 = vmatpush.msra.mxu0 0.0
      %1091 = vmatpush.msra.mxu0 0.0
      %1092 = vmatpush.msra.mxu0 0.0
      %1093 = vmatpush.msra.mxu0 %v1036
      %1094 = vmatpush.msra.mxu0 %v1034
      %1095 = vmatmul.f32.gmra.mxu0 %v1068
      %v1096 = vpop.f32.mrf.mxu0
      %v1097 = vadd.f32 %v1049, %v1096
      %1098 = vmatmul.f32.gmra.mxu0 %v1071
      %v1099 = vpop.f32.mrf.mxu0
      %v1100 = vadd.f32 %v1054, %v1099
      %1101 = vmatmul.f32.gmra.mxu0 %v1074
      %v1102 = vpop.f32.mrf.mxu0
      %v1103 = vadd.f32 %v1059, %v1102
      %1104 = vmatmul.f32.gmra.mxu0 %v1077
      %v1105 = vpop.f32.mrf.mxu0
      %v1106 = vadd.f32 %v1064, %v1105
      %1107 = vdwg.mxu0
      %1108 = vmatpush.msra.mxu0 0.0
      %1109 = vmatpush.msra.mxu0 0.0
      %1110 = vmatpush.msra.mxu0 0.0
      %1111 = vmatpush.msra.mxu0 0.0
      %1112 = vmatpush.msra.mxu0 0.0
      %1113 = vmatpush.msra.mxu0 0.0
      %1114 = vmatpush.msra.mxu0 0.0
      %1115 = vmatpush.msra.mxu0 0.0
      %1116 = vmatpush.msra.mxu0 0.0
      %1117 = vmatpush.msra.mxu0 0.0
      %1118 = vmatpush.msra.mxu0 0.0
      %1119 = vmatpush.msra.mxu0 0.0
      %1120 = vmatpush.msra.mxu0 0.0
      %1121 = vmatpush.msra.mxu0 0.0
      %1122 = vmatpush.msra.mxu0 %v1037
      %1123 = vmatpush.msra.mxu0 %v1035
      %1124 = vmatmul.f32.gmra.mxu0 %v1068
      %v1125 = vpop.f32.mrf.mxu0
      %v1126 = vadd.f32 %v1049, %v1125
      %1127 = vmatmul.f32.gmra.mxu0 %v1071
      %v1128 = vpop.f32.mrf.mxu0
      %v1129 = vadd.f32 %v1054, %v1128
      %1130 = vmatmul.f32.gmra.mxu0 %v1074
      %v1131 = vpop.f32.mrf.mxu0
      %v1132 = vadd.f32 %v1059, %v1131
      %1133 = vmatmul.f32.gmra.mxu0 %v1077
      %v1134 = vpop.f32.mrf.mxu0
      %v1135 = vadd.f32 %v1064, %v1134
      %1136 = vdwg.mxu0
      %v1137 = vld [vmem:[%s8] sm:$0xff]
      %v1138 = vld [vmem:[%s8 + $0x8] sm:$0xff]
      %v1139 = vld [vmem:[%s8 + $0x10] sm:$0xff]
      %v1140 = vld [vmem:[%s8 + $0x18] sm:$0xff]
      %v1141 = vld [vmem:[%s9] sm:$0xff]
      %v1142 = vld [vmem:[%s9 + $0x8] sm:$0xff]
      %v1143 = vld [vmem:[%s9 + $0x10] sm:$0xff]
      %v1144 = vld [vmem:[%s9 + $0x18] sm:$0xff]
      %1145 = vrot.lane.b32.xlu0 %v1097, 17
      %v1146 = vpop.permute.xlu0 %1145
      %1147 = vrot.lane.b32.xlu0 %v1100, 17
      %v1148 = vpop.permute.xlu0 %1147
      %1149 = vrot.lane.b32.xlu0 %v1103, 17
      %v1150 = vpop.permute.xlu0 %1149
      %1151 = vrot.lane.b32.xlu0 %v1106, 17
      %v1152 = vpop.permute.xlu0 %1151
      %1153 = vrot.lane.b32.xlu0 %v1126, 17
      %v1154 = vpop.permute.xlu0 %1153
      %1155 = vrot.lane.b32.xlu0 %v1129, 17
      %v1156 = vpop.permute.xlu0 %1155
      %1157 = vrot.lane.b32.xlu0 %v1132, 17
      %v1158 = vpop.permute.xlu0 %1157
      %1159 = vrot.lane.b32.xlu0 %v1135, 17
      %v1160 = vpop.permute.xlu0 %1159
      %v1161 = vsel %vm754, %v1146, %v1154
      %v1162 = vsel %vm754, %v1148, %v1156
      %v1163 = vsel %vm754, %v1150, %v1158
      %v1164 = vsel %vm754, %v1152, %v1160
      %v1165 = vsel %vm754, %v1154, %v1146
      %v1166 = vsel %vm754, %v1156, %v1148
      %v1167 = vsel %vm754, %v1158, %v1150
      %v1168 = vsel %vm754, %v1160, %v1152
      %v1169 = vmul.f32 %v1165, %v757
      %v1170 = vmul.f32 %v1161, %v758
      %v1171 = vmul.f32 %v1166, %v757
      %v1172 = vmul.f32 %v1162, %v758
      %v1173 = vmul.f32 %v1167, %v757
      %v1174 = vmul.f32 %v1163, %v758
      %v1175 = vmul.f32 %v1168, %v757
      %v1176 = vmul.f32 %v1164, %v758
      %1178 = vset.pattern.permute.xlu0 0
      %1179 = vperm.xlu0 %1178, %v1137
      %v1180 = vpop.permute.xlu0 %1179
      %1183 = vset.pattern.permute.xlu0 0
      %1184 = vperm.xlu0 %1183, %v1138
      %v1185 = vpop.permute.xlu0 %1184
      %1188 = vset.pattern.permute.xlu0 0
      %1189 = vperm.xlu0 %1188, %v1139
      %v1190 = vpop.permute.xlu0 %1189
      %1193 = vset.pattern.permute.xlu0 0
      %1194 = vperm.xlu0 %1193, %v1140
      %v1195 = vpop.permute.xlu0 %1194
      %v1197 = vmul.f32 %v1169, %v1180
      %v1198 = vmul.f32 %v1170, %v1180
      %v1199 = vmul.f32 %v1171, %v1185
      %v1200 = vmul.f32 %v1172, %v1185
      %v1201 = vmul.f32 %v1173, %v1190
      %v1202 = vmul.f32 %v1174, %v1190
      %v1203 = vmul.f32 %v1175, %v1195
      %v1204 = vmul.f32 %v1176, %v1195
      %v1205 = vadd.f32 %v1197, 0.0
      %v1206 = vadd.f32 %v1198, 0.0
      %v1207 = vadd.f32 %v1199, 0.0
      %v1208 = vadd.f32 %v1200, 0.0
      %v1209 = vadd.f32 %v1201, 0.0
      %v1210 = vadd.f32 %v1202, 0.0
      %v1211 = vadd.f32 %v1203, 0.0
      %v1212 = vadd.f32 %v1204, 0.0
      %1213 = vrot.lane.b32.xlu0 %v1097, 16
      %v1214 = vpop.permute.xlu0 %1213
      %1215 = vrot.lane.b32.xlu0 %v1100, 16
      %v1216 = vpop.permute.xlu0 %1215
      %1217 = vrot.lane.b32.xlu0 %v1103, 16
      %v1218 = vpop.permute.xlu0 %1217
      %1219 = vrot.lane.b32.xlu0 %v1106, 16
      %v1220 = vpop.permute.xlu0 %1219
      %1221 = vrot.lane.b32.xlu0 %v1126, 16
      %v1222 = vpop.permute.xlu0 %1221
      %1223 = vrot.lane.b32.xlu0 %v1129, 16
      %v1224 = vpop.permute.xlu0 %1223
      %1225 = vrot.lane.b32.xlu0 %v1132, 16
      %v1226 = vpop.permute.xlu0 %1225
      %1227 = vrot.lane.b32.xlu0 %v1135, 16
      %v1228 = vpop.permute.xlu0 %1227
      %v1229 = vsel %vm765, %v1214, %v1222
      %v1230 = vsel %vm765, %v1216, %v1224
      %v1231 = vsel %vm765, %v1218, %v1226
      %v1232 = vsel %vm765, %v1220, %v1228
      %v1233 = vsel %vm765, %v1222, %v1214
      %v1234 = vsel %vm765, %v1224, %v1216
      %v1235 = vsel %vm765, %v1226, %v1218
      %v1236 = vsel %vm765, %v1228, %v1220
      %v1237 = vmul.f32 %v1233, %v768
      %v1238 = vmul.f32 %v1229, %v769
      %v1239 = vmul.f32 %v1234, %v768
      %v1240 = vmul.f32 %v1230, %v769
      %v1241 = vmul.f32 %v1235, %v768
      %v1242 = vmul.f32 %v1231, %v769
      %v1243 = vmul.f32 %v1236, %v768
      %v1244 = vmul.f32 %v1232, %v769
      %1245 = vset.pattern.permute.xlu0 1
      %1246 = vperm.xlu0 %1245, %v1137
      %v1247 = vpop.permute.xlu0 %1246
      %1249 = vset.pattern.permute.xlu0 1
      %1250 = vperm.xlu0 %1249, %v1138
      %v1251 = vpop.permute.xlu0 %1250
      %1253 = vset.pattern.permute.xlu0 1
      %1254 = vperm.xlu0 %1253, %v1139
      %v1255 = vpop.permute.xlu0 %1254
      %1257 = vset.pattern.permute.xlu0 1
      %1258 = vperm.xlu0 %1257, %v1140
      %v1259 = vpop.permute.xlu0 %1258
      %v1261 = vmul.f32 %v1237, %v1247
      %v1262 = vmul.f32 %v1238, %v1247
      %v1263 = vmul.f32 %v1239, %v1251
      %v1264 = vmul.f32 %v1240, %v1251
      %v1265 = vmul.f32 %v1241, %v1255
      %v1266 = vmul.f32 %v1242, %v1255
      %v1267 = vmul.f32 %v1243, %v1259
      %v1268 = vmul.f32 %v1244, %v1259
      %v1269 = vadd.f32 %v1205, %v1261
      %v1270 = vadd.f32 %v1206, %v1262
      %v1271 = vadd.f32 %v1207, %v1263
      %v1272 = vadd.f32 %v1208, %v1264
      %v1273 = vadd.f32 %v1209, %v1265
      %v1274 = vadd.f32 %v1210, %v1266
      %v1275 = vadd.f32 %v1211, %v1267
      %v1276 = vadd.f32 %v1212, %v1268
      %1277 = vrot.lane.b32.xlu0 %v1097, 15
      %v1278 = vpop.permute.xlu0 %1277
      %1279 = vrot.lane.b32.xlu0 %v1100, 15
      %v1280 = vpop.permute.xlu0 %1279
      %1281 = vrot.lane.b32.xlu0 %v1103, 15
      %v1282 = vpop.permute.xlu0 %1281
      %1283 = vrot.lane.b32.xlu0 %v1106, 15
      %v1284 = vpop.permute.xlu0 %1283
      %1285 = vrot.lane.b32.xlu0 %v1126, 15
      %v1286 = vpop.permute.xlu0 %1285
      %1287 = vrot.lane.b32.xlu0 %v1129, 15
      %v1288 = vpop.permute.xlu0 %1287
      %1289 = vrot.lane.b32.xlu0 %v1132, 15
      %v1290 = vpop.permute.xlu0 %1289
      %1291 = vrot.lane.b32.xlu0 %v1135, 15
      %v1292 = vpop.permute.xlu0 %1291
      %v1293 = vsel %vm776, %v1278, %v1286
      %v1294 = vsel %vm776, %v1280, %v1288
      %v1295 = vsel %vm776, %v1282, %v1290
      %v1296 = vsel %vm776, %v1284, %v1292
      %v1297 = vsel %vm776, %v1286, %v1278
      %v1298 = vsel %vm776, %v1288, %v1280
      %v1299 = vsel %vm776, %v1290, %v1282
      %v1300 = vsel %vm776, %v1292, %v1284
      %v1301 = vmul.f32 %v1297, %v779
      %v1302 = vmul.f32 %v1293, %v780
      %v1303 = vmul.f32 %v1298, %v779
      %v1304 = vmul.f32 %v1294, %v780
      %v1305 = vmul.f32 %v1299, %v779
      %v1306 = vmul.f32 %v1295, %v780
      %v1307 = vmul.f32 %v1300, %v779
      %v1308 = vmul.f32 %v1296, %v780
      %1309 = vset.pattern.permute.xlu0 2
      %1310 = vperm.xlu0 %1309, %v1137
      %v1311 = vpop.permute.xlu0 %1310
      %1313 = vset.pattern.permute.xlu0 2
      %1314 = vperm.xlu0 %1313, %v1138
      %v1315 = vpop.permute.xlu0 %1314
      %1317 = vset.pattern.permute.xlu0 2
      %1318 = vperm.xlu0 %1317, %v1139
      %v1319 = vpop.permute.xlu0 %1318
      %1321 = vset.pattern.permute.xlu0 2
      %1322 = vperm.xlu0 %1321, %v1140
      %v1323 = vpop.permute.xlu0 %1322
      %v1325 = vmul.f32 %v1301, %v1311
      %v1326 = vmul.f32 %v1302, %v1311
      %v1327 = vmul.f32 %v1303, %v1315
      %v1328 = vmul.f32 %v1304, %v1315
      %v1329 = vmul.f32 %v1305, %v1319
      %v1330 = vmul.f32 %v1306, %v1319
      %v1331 = vmul.f32 %v1307, %v1323
      %v1332 = vmul.f32 %v1308, %v1323
      %v1333 = vadd.f32 %v1269, %v1325
      %v1334 = vadd.f32 %v1270, %v1326
      %v1335 = vadd.f32 %v1271, %v1327
      %v1336 = vadd.f32 %v1272, %v1328
      %v1337 = vadd.f32 %v1273, %v1329
      %v1338 = vadd.f32 %v1274, %v1330
      %v1339 = vadd.f32 %v1275, %v1331
      %v1340 = vadd.f32 %v1276, %v1332
      %1341 = vrot.lane.b32.xlu0 %v1097, 1
      %v1342 = vpop.permute.xlu0 %1341
      %1343 = vrot.lane.b32.xlu0 %v1100, 1
      %v1344 = vpop.permute.xlu0 %1343
      %1345 = vrot.lane.b32.xlu0 %v1103, 1
      %v1346 = vpop.permute.xlu0 %1345
      %1347 = vrot.lane.b32.xlu0 %v1106, 1
      %v1348 = vpop.permute.xlu0 %1347
      %1349 = vrot.lane.b32.xlu0 %v1126, 1
      %v1350 = vpop.permute.xlu0 %1349
      %1351 = vrot.lane.b32.xlu0 %v1129, 1
      %v1352 = vpop.permute.xlu0 %1351
      %1353 = vrot.lane.b32.xlu0 %v1132, 1
      %v1354 = vpop.permute.xlu0 %1353
      %1355 = vrot.lane.b32.xlu0 %v1135, 1
      %v1356 = vpop.permute.xlu0 %1355
      %v1357 = vsel %vm787, %v1342, %v1350
      %v1358 = vsel %vm787, %v1344, %v1352
      %v1359 = vsel %vm787, %v1346, %v1354
      %v1360 = vsel %vm787, %v1348, %v1356
      %v1361 = vsel %vm787, %v1350, %v1342
      %v1362 = vsel %vm787, %v1352, %v1344
      %v1363 = vsel %vm787, %v1354, %v1346
      %v1364 = vsel %vm787, %v1356, %v1348
      %v1365 = vmul.f32 %v1361, %v790
      %v1366 = vmul.f32 %v1357, %v791
      %v1367 = vmul.f32 %v1362, %v790
      %v1368 = vmul.f32 %v1358, %v791
      %v1369 = vmul.f32 %v1363, %v790
      %v1370 = vmul.f32 %v1359, %v791
      %v1371 = vmul.f32 %v1364, %v790
      %v1372 = vmul.f32 %v1360, %v791
      %1373 = vset.pattern.permute.xlu0 3
      %1374 = vperm.xlu0 %1373, %v1137
      %v1375 = vpop.permute.xlu0 %1374
      %1377 = vset.pattern.permute.xlu0 3
      %1378 = vperm.xlu0 %1377, %v1138
      %v1379 = vpop.permute.xlu0 %1378
      %1381 = vset.pattern.permute.xlu0 3
      %1382 = vperm.xlu0 %1381, %v1139
      %v1383 = vpop.permute.xlu0 %1382
      %1385 = vset.pattern.permute.xlu0 3
      %1386 = vperm.xlu0 %1385, %v1140
      %v1387 = vpop.permute.xlu0 %1386
      %v1389 = vmul.f32 %v1365, %v1375
      %v1390 = vmul.f32 %v1366, %v1375
      %v1391 = vmul.f32 %v1367, %v1379
      %v1392 = vmul.f32 %v1368, %v1379
      %v1393 = vmul.f32 %v1369, %v1383
      %v1394 = vmul.f32 %v1370, %v1383
      %v1395 = vmul.f32 %v1371, %v1387
      %v1396 = vmul.f32 %v1372, %v1387
      %v1397 = vadd.f32 %v1333, %v1389
      %v1398 = vadd.f32 %v1334, %v1390
      %v1399 = vadd.f32 %v1335, %v1391
      %v1400 = vadd.f32 %v1336, %v1392
      %v1401 = vadd.f32 %v1337, %v1393
      %v1402 = vadd.f32 %v1338, %v1394
      %v1403 = vadd.f32 %v1339, %v1395
      %v1404 = vadd.f32 %v1340, %v1396
      %1405 = vset.pattern.permute.xlu0 4
      %1406 = vperm.xlu0 %1405, %v1137
      %v1407 = vpop.permute.xlu0 %1406
      %1409 = vset.pattern.permute.xlu0 4
      %1410 = vperm.xlu0 %1409, %v1138
      %v1411 = vpop.permute.xlu0 %1410
      %1413 = vset.pattern.permute.xlu0 4
      %1414 = vperm.xlu0 %1413, %v1139
      %v1415 = vpop.permute.xlu0 %1414
      %1417 = vset.pattern.permute.xlu0 4
      %1418 = vperm.xlu0 %1417, %v1140
      %v1419 = vpop.permute.xlu0 %1418
      %v1421 = vmul.f32 %v1097, %v1407
      %v1422 = vmul.f32 %v1126, %v1407
      %v1423 = vmul.f32 %v1100, %v1411
      %v1424 = vmul.f32 %v1129, %v1411
      %v1425 = vmul.f32 %v1103, %v1415
      %v1426 = vmul.f32 %v1132, %v1415
      %v1427 = vmul.f32 %v1106, %v1419
      %v1428 = vmul.f32 %v1135, %v1419
      %v1429 = vadd.f32 %v1397, %v1421
      %v1430 = vadd.f32 %v1398, %v1422
      %v1431 = vadd.f32 %v1399, %v1423
      %v1432 = vadd.f32 %v1400, %v1424
      %v1433 = vadd.f32 %v1401, %v1425
      %v1434 = vadd.f32 %v1402, %v1426
      %v1435 = vadd.f32 %v1403, %v1427
      %v1436 = vadd.f32 %v1404, %v1428
      %1437 = vrot.lane.b32.xlu0 %v1097, 127
      %v1438 = vpop.permute.xlu0 %1437
      %1439 = vrot.lane.b32.xlu0 %v1100, 127
      %v1440 = vpop.permute.xlu0 %1439
      %1441 = vrot.lane.b32.xlu0 %v1103, 127
      %v1442 = vpop.permute.xlu0 %1441
      %1443 = vrot.lane.b32.xlu0 %v1106, 127
      %v1444 = vpop.permute.xlu0 %1443
      %1445 = vrot.lane.b32.xlu0 %v1126, 127
      %v1446 = vpop.permute.xlu0 %1445
      %1447 = vrot.lane.b32.xlu0 %v1129, 127
      %v1448 = vpop.permute.xlu0 %1447
      %1449 = vrot.lane.b32.xlu0 %v1132, 127
      %v1450 = vpop.permute.xlu0 %1449
      %1451 = vrot.lane.b32.xlu0 %v1135, 127
      %v1452 = vpop.permute.xlu0 %1451
      %v1453 = vsel %vm798, %v1438, %v1446
      %v1454 = vsel %vm798, %v1440, %v1448
      %v1455 = vsel %vm798, %v1442, %v1450
      %v1456 = vsel %vm798, %v1444, %v1452
      %v1457 = vsel %vm798, %v1446, %v1438
      %v1458 = vsel %vm798, %v1448, %v1440
      %v1459 = vsel %vm798, %v1450, %v1442
      %v1460 = vsel %vm798, %v1452, %v1444
      %v1461 = vmul.f32 %v1453, %v801
      %v1462 = vmul.f32 %v1457, %v802
      %v1463 = vmul.f32 %v1454, %v801
      %v1464 = vmul.f32 %v1458, %v802
      %v1465 = vmul.f32 %v1455, %v801
      %v1466 = vmul.f32 %v1459, %v802
      %v1467 = vmul.f32 %v1456, %v801
      %v1468 = vmul.f32 %v1460, %v802
      %1469 = vset.pattern.permute.xlu0 5
      %1470 = vperm.xlu0 %1469, %v1137
      %v1471 = vpop.permute.xlu0 %1470
      %1473 = vset.pattern.permute.xlu0 5
      %1474 = vperm.xlu0 %1473, %v1138
      %v1475 = vpop.permute.xlu0 %1474
      %1477 = vset.pattern.permute.xlu0 5
      %1478 = vperm.xlu0 %1477, %v1139
      %v1479 = vpop.permute.xlu0 %1478
      %1481 = vset.pattern.permute.xlu0 5
      %1482 = vperm.xlu0 %1481, %v1140
      %v1483 = vpop.permute.xlu0 %1482
      %v1485 = vmul.f32 %v1461, %v1471
      %v1486 = vmul.f32 %v1462, %v1471
      %v1487 = vmul.f32 %v1463, %v1475
      %v1488 = vmul.f32 %v1464, %v1475
      %v1489 = vmul.f32 %v1465, %v1479
      %v1490 = vmul.f32 %v1466, %v1479
      %v1491 = vmul.f32 %v1467, %v1483
      %v1492 = vmul.f32 %v1468, %v1483
      %v1493 = vadd.f32 %v1429, %v1485
      %v1494 = vadd.f32 %v1430, %v1486
      %v1495 = vadd.f32 %v1431, %v1487
      %v1496 = vadd.f32 %v1432, %v1488
      %v1497 = vadd.f32 %v1433, %v1489
      %v1498 = vadd.f32 %v1434, %v1490
      %v1499 = vadd.f32 %v1435, %v1491
      %v1500 = vadd.f32 %v1436, %v1492
      %1501 = vrot.lane.b32.xlu0 %v1097, 113
      %v1502 = vpop.permute.xlu0 %1501
      %1503 = vrot.lane.b32.xlu0 %v1100, 113
      %v1504 = vpop.permute.xlu0 %1503
      %1505 = vrot.lane.b32.xlu0 %v1103, 113
      %v1506 = vpop.permute.xlu0 %1505
      %1507 = vrot.lane.b32.xlu0 %v1106, 113
      %v1508 = vpop.permute.xlu0 %1507
      %1509 = vrot.lane.b32.xlu0 %v1126, 113
      %v1510 = vpop.permute.xlu0 %1509
      %1511 = vrot.lane.b32.xlu0 %v1129, 113
      %v1512 = vpop.permute.xlu0 %1511
      %1513 = vrot.lane.b32.xlu0 %v1132, 113
      %v1514 = vpop.permute.xlu0 %1513
      %1515 = vrot.lane.b32.xlu0 %v1135, 113
      %v1516 = vpop.permute.xlu0 %1515
      %v1517 = vsel %vm809, %v1502, %v1510
      %v1518 = vsel %vm809, %v1504, %v1512
      %v1519 = vsel %vm809, %v1506, %v1514
      %v1520 = vsel %vm809, %v1508, %v1516
      %v1521 = vsel %vm809, %v1510, %v1502
      %v1522 = vsel %vm809, %v1512, %v1504
      %v1523 = vsel %vm809, %v1514, %v1506
      %v1524 = vsel %vm809, %v1516, %v1508
      %v1525 = vmul.f32 %v1517, %v812
      %v1526 = vmul.f32 %v1521, %v813
      %v1527 = vmul.f32 %v1518, %v812
      %v1528 = vmul.f32 %v1522, %v813
      %v1529 = vmul.f32 %v1519, %v812
      %v1530 = vmul.f32 %v1523, %v813
      %v1531 = vmul.f32 %v1520, %v812
      %v1532 = vmul.f32 %v1524, %v813
      %1533 = vset.pattern.permute.xlu0 6
      %1534 = vperm.xlu0 %1533, %v1137
      %v1535 = vpop.permute.xlu0 %1534
      %1537 = vset.pattern.permute.xlu0 6
      %1538 = vperm.xlu0 %1537, %v1138
      %v1539 = vpop.permute.xlu0 %1538
      %1541 = vset.pattern.permute.xlu0 6
      %1542 = vperm.xlu0 %1541, %v1139
      %v1543 = vpop.permute.xlu0 %1542
      %1545 = vset.pattern.permute.xlu0 6
      %1546 = vperm.xlu0 %1545, %v1140
      %v1547 = vpop.permute.xlu0 %1546
      %v1549 = vmul.f32 %v1525, %v1535
      %v1550 = vmul.f32 %v1526, %v1535
      %v1551 = vmul.f32 %v1527, %v1539
      %v1552 = vmul.f32 %v1528, %v1539
      %v1553 = vmul.f32 %v1529, %v1543
      %v1554 = vmul.f32 %v1530, %v1543
      %v1555 = vmul.f32 %v1531, %v1547
      %v1556 = vmul.f32 %v1532, %v1547
      %v1557 = vadd.f32 %v1493, %v1549
      %v1558 = vadd.f32 %v1494, %v1550
      %v1559 = vadd.f32 %v1495, %v1551
      %v1560 = vadd.f32 %v1496, %v1552
      %v1561 = vadd.f32 %v1497, %v1553
      %v1562 = vadd.f32 %v1498, %v1554
      %v1563 = vadd.f32 %v1499, %v1555
      %v1564 = vadd.f32 %v1500, %v1556
      %1565 = vrot.lane.b32.xlu0 %v1097, 112
      %v1566 = vpop.permute.xlu0 %1565
      %1567 = vrot.lane.b32.xlu0 %v1100, 112
      %v1568 = vpop.permute.xlu0 %1567
      %1569 = vrot.lane.b32.xlu0 %v1103, 112
      %v1570 = vpop.permute.xlu0 %1569
      %1571 = vrot.lane.b32.xlu0 %v1106, 112
      %v1572 = vpop.permute.xlu0 %1571
      %1573 = vrot.lane.b32.xlu0 %v1126, 112
      %v1574 = vpop.permute.xlu0 %1573
      %1575 = vrot.lane.b32.xlu0 %v1129, 112
      %v1576 = vpop.permute.xlu0 %1575
      %1577 = vrot.lane.b32.xlu0 %v1132, 112
      %v1578 = vpop.permute.xlu0 %1577
      %1579 = vrot.lane.b32.xlu0 %v1135, 112
      %v1580 = vpop.permute.xlu0 %1579
      %v1581 = vsel %vm820, %v1566, %v1574
      %v1582 = vsel %vm820, %v1568, %v1576
      %v1583 = vsel %vm820, %v1570, %v1578
      %v1584 = vsel %vm820, %v1572, %v1580
      %v1585 = vsel %vm820, %v1574, %v1566
      %v1586 = vsel %vm820, %v1576, %v1568
      %v1587 = vsel %vm820, %v1578, %v1570
      %v1588 = vsel %vm820, %v1580, %v1572
      %v1589 = vmul.f32 %v1581, %v823
      %v1590 = vmul.f32 %v1585, %v824
      %v1591 = vmul.f32 %v1582, %v823
      %v1592 = vmul.f32 %v1586, %v824
      %v1593 = vmul.f32 %v1583, %v823
      %v1594 = vmul.f32 %v1587, %v824
      %v1595 = vmul.f32 %v1584, %v823
      %v1596 = vmul.f32 %v1588, %v824
      %1597 = vset.pattern.permute.xlu0 7
      %1598 = vperm.xlu0 %1597, %v1137
      %v1599 = vpop.permute.xlu0 %1598
      %1601 = vset.pattern.permute.xlu0 7
      %1602 = vperm.xlu0 %1601, %v1138
      %v1603 = vpop.permute.xlu0 %1602
      %1605 = vset.pattern.permute.xlu0 7
      %1606 = vperm.xlu0 %1605, %v1139
      %v1607 = vpop.permute.xlu0 %1606
      %1609 = vset.pattern.permute.xlu0 7
      %1610 = vperm.xlu0 %1609, %v1140
      %v1611 = vpop.permute.xlu0 %1610
      %v1613 = vmul.f32 %v1589, %v1599
      %v1614 = vmul.f32 %v1590, %v1599
      %v1615 = vmul.f32 %v1591, %v1603
      %v1616 = vmul.f32 %v1592, %v1603
      %v1617 = vmul.f32 %v1593, %v1607
      %v1618 = vmul.f32 %v1594, %v1607
      %v1619 = vmul.f32 %v1595, %v1611
      %v1620 = vmul.f32 %v1596, %v1611
      %v1621 = vadd.f32 %v1557, %v1613
      %v1622 = vadd.f32 %v1558, %v1614
      %v1623 = vadd.f32 %v1559, %v1615
      %v1624 = vadd.f32 %v1560, %v1616
      %v1625 = vadd.f32 %v1561, %v1617
      %v1626 = vadd.f32 %v1562, %v1618
      %v1627 = vadd.f32 %v1563, %v1619
      %v1628 = vadd.f32 %v1564, %v1620
      %1629 = vrot.lane.b32.xlu0 %v1097, 111
      %v1630 = vpop.permute.xlu0 %1629
      %1631 = vrot.lane.b32.xlu0 %v1100, 111
      %v1632 = vpop.permute.xlu0 %1631
      %1633 = vrot.lane.b32.xlu0 %v1103, 111
      %v1634 = vpop.permute.xlu0 %1633
      %1635 = vrot.lane.b32.xlu0 %v1106, 111
      %v1636 = vpop.permute.xlu0 %1635
      %1637 = vrot.lane.b32.xlu0 %v1126, 111
      %v1638 = vpop.permute.xlu0 %1637
      %1639 = vrot.lane.b32.xlu0 %v1129, 111
      %v1640 = vpop.permute.xlu0 %1639
      %1641 = vrot.lane.b32.xlu0 %v1132, 111
      %v1642 = vpop.permute.xlu0 %1641
      %1643 = vrot.lane.b32.xlu0 %v1135, 111
      %v1644 = vpop.permute.xlu0 %1643
      %v1645 = vsel %vm831, %v1630, %v1638
      %v1646 = vsel %vm831, %v1632, %v1640
      %v1647 = vsel %vm831, %v1634, %v1642
      %v1648 = vsel %vm831, %v1636, %v1644
      %v1649 = vsel %vm831, %v1638, %v1630
      %v1650 = vsel %vm831, %v1640, %v1632
      %v1651 = vsel %vm831, %v1642, %v1634
      %v1652 = vsel %vm831, %v1644, %v1636
      %v1653 = vmul.f32 %v1645, %v834
      %v1654 = vmul.f32 %v1649, %v835
      %v1655 = vmul.f32 %v1646, %v834
      %v1656 = vmul.f32 %v1650, %v835
      %v1657 = vmul.f32 %v1647, %v834
      %v1658 = vmul.f32 %v1651, %v835
      %v1659 = vmul.f32 %v1648, %v834
      %v1660 = vmul.f32 %v1652, %v835
      %1661 = vset.pattern.permute.xlu0 8
      %1662 = vperm.xlu0 %1661, %v1137
      %v1663 = vpop.permute.xlu0 %1662
      %1665 = vset.pattern.permute.xlu0 8
      %1666 = vperm.xlu0 %1665, %v1138
      %v1667 = vpop.permute.xlu0 %1666
      %1669 = vset.pattern.permute.xlu0 8
      %1670 = vperm.xlu0 %1669, %v1139
      %v1671 = vpop.permute.xlu0 %1670
      %1673 = vset.pattern.permute.xlu0 8
      %1674 = vperm.xlu0 %1673, %v1140
      %v1675 = vpop.permute.xlu0 %1674
      %v1677 = vmul.f32 %v1653, %v1663
      %v1678 = vmul.f32 %v1654, %v1663
      %v1679 = vmul.f32 %v1655, %v1667
      %v1680 = vmul.f32 %v1656, %v1667
      %v1681 = vmul.f32 %v1657, %v1671
      %v1682 = vmul.f32 %v1658, %v1671
      %v1683 = vmul.f32 %v1659, %v1675
      %v1684 = vmul.f32 %v1660, %v1675
      %v1685 = vadd.f32 %v1621, %v1677
      %v1686 = vadd.f32 %v1622, %v1678
      %v1687 = vadd.f32 %v1623, %v1679
      %v1688 = vadd.f32 %v1624, %v1680
      %v1689 = vadd.f32 %v1625, %v1681
      %v1690 = vadd.f32 %v1626, %v1682
      %v1691 = vadd.f32 %v1627, %v1683
      %v1692 = vadd.f32 %v1628, %v1684
      %1694 = vset.pattern.permute.xlu0 0
      %1695 = vperm.xlu0 %1694, %v1141
      %v1696 = vpop.permute.xlu0 %1695
      %1699 = vset.pattern.permute.xlu0 0
      %1700 = vperm.xlu0 %1699, %v1142
      %v1701 = vpop.permute.xlu0 %1700
      %1704 = vset.pattern.permute.xlu0 0
      %1705 = vperm.xlu0 %1704, %v1143
      %v1706 = vpop.permute.xlu0 %1705
      %1709 = vset.pattern.permute.xlu0 0
      %1710 = vperm.xlu0 %1709, %v1144
      %v1711 = vpop.permute.xlu0 %1710
      %v1713 = vadd.f32 %v1685, %v1696
      %v1714 = vadd.f32 %v1686, %v1696
      %v1715 = vadd.f32 %v1687, %v1701
      %v1716 = vadd.f32 %v1688, %v1701
      %v1717 = vadd.f32 %v1689, %v1706
      %v1718 = vadd.f32 %v1690, %v1706
      %v1719 = vadd.f32 %v1691, %v1711
      %v1720 = vadd.f32 %v1692, %v1711
      %v1721 = vmul.f32 %v1713, %v1717
      %v1722 = vmul.f32 %v1714, %v1718
      %v1723 = vmul.f32 %v1715, %v1719
      %v1724 = vmul.f32 %v1716, %v1720
      %v1725 = vadd.f32 %v1721, %v1722
      %1726 = vadd.xlane.f32.xlu0 %v1725
      %v1727 = vpop.xlane.xlu0 %1726
      %v1728 = vadd.f32 %v1723, %v1724
      %1729 = vadd.xlane.f32.xlu0 %v1728
      %v1730 = vpop.xlane.xlu0 %1729
      %v1731 = vrcp.pop 256.0
      %v1732 = vmul.f32 256.0, %v1731
      %v1733 = vsub.f32 1.0, %v1732
      %v1734 = vmul.f32 %v1731, %v1733
      %v1735 = vadd.f32 %v1731, %v1734
      %vm1736 = vweird.f32 %v1731
      %v1737 = vsel %vm1736, %v1731, %v1735
      %v1738 = vmul.f32 %v1727, %v1737
      %v1739 = vmul.f32 %v1730, %v1737
      %v1740 = vld [vmem:[%s10] sm:$0xff]
      %v1741 = vld [vmem:[%s10 + $0x8] sm:$0xff]
      %v1742 = vld [vmem:[%s11] sm:$0xff]
      %v1743 = vld [vmem:[%s11 + $0x8] sm:$0xff]
      %v1745 = vsel %vm1066, %v1740, 0
      %v1748 = vsel %vm1066, %v1741, 0
      %1750 = vmatpush.msra.mxu0 0.0
      %1751 = vmatpush.msra.mxu0 0.0
      %1752 = vmatpush.msra.mxu0 0.0
      %1753 = vmatpush.msra.mxu0 0.0
      %1754 = vmatpush.msra.mxu0 0.0
      %1755 = vmatpush.msra.mxu0 0.0
      %1756 = vmatpush.msra.mxu0 0.0
      %1757 = vmatpush.msra.mxu0 0.0
      %1758 = vmatpush.msra.mxu0 0.0
      %1759 = vmatpush.msra.mxu0 0.0
      %1760 = vmatpush.msra.mxu0 0.0
      %1761 = vmatpush.msra.mxu0 0.0
      %1762 = vmatpush.msra.mxu0 0.0
      %1763 = vmatpush.msra.mxu0 0.0
      %1764 = vmatpush.msra.mxu0 %v1739
      %1765 = vmatpush.msra.mxu0 %v1738
      %1766 = vmatmul.f32.gmra.mxu0 %v1745
      %v1767 = vpop.f32.mrf.mxu0
      %v1768 = vadd.f32 %v1742, %v1767
      %1769 = vmatmul.f32.gmra.mxu0 %v1748
      %v1770 = vpop.f32.mrf.mxu0
      %v1771 = vadd.f32 %v1743, %v1770
      %1772 = vdwg.mxu0
      %1774 = vset.pattern.permute.xlu0 0
      %1775 = vperm.xlu0 %1774, %v1768
      %v1776 = vpop.permute.xlu0 %1775
      %1779 = vset.pattern.permute.xlu0 0
      %1780 = vperm.xlu0 %1779, %v1771
      %v1781 = vpop.permute.xlu0 %1780
      %v1783 = vmul.f32 %v1721, %v1776
      %v1784 = vmul.f32 %v1722, %v1776
      %v1785 = vmul.f32 %v1723, %v1781
      %v1786 = vmul.f32 %v1724, %v1781
      %v1787 = vld [vmem:[%s12] sm:$0xff]
      %v1788 = vld [vmem:[%s12 + $0x8] sm:$0xff]
      %v1789 = vld [vmem:[%s13] sm:$0xff]
      %v1790 = vld [vmem:[%s13 + $0x8] sm:$0xff]
      %1792 = vset.pattern.permute.xlu0 0
      %1793 = vperm.xlu0 %1792, %v1789
      %v1794 = vpop.permute.xlu0 %1793
      %1797 = vset.pattern.permute.xlu0 0
      %1798 = vperm.xlu0 %1797, %v1790
      %v1799 = vpop.permute.xlu0 %1798
      %v1802 = vsel %vm1066, %v1787, 0
      %v1805 = vsel %vm1066, %v1788, 0
      %1807 = vmatpush.msra.mxu0 0.0
      %1808 = vmatpush.msra.mxu0 0.0
      %1809 = vmatpush.msra.mxu0 0.0
      %1810 = vmatpush.msra.mxu0 0.0
      %1811 = vmatpush.msra.mxu0 0.0
      %1812 = vmatpush.msra.mxu0 0.0
      %1813 = vmatpush.msra.mxu0 0.0
      %1814 = vmatpush.msra.mxu0 0.0
      %1815 = vmatpush.msra.mxu0 0.0
      %1816 = vmatpush.msra.mxu0 0.0
      %1817 = vmatpush.msra.mxu0 0.0
      %1818 = vmatpush.msra.mxu0 0.0
      %1819 = vmatpush.msra.mxu0 0.0
      %1820 = vmatpush.msra.mxu0 0.0
      %1821 = vmatpush.msra.mxu0 %v1785
      %1822 = vmatpush.msra.mxu0 %v1783
      %1823 = vmatmul.f32.gmra.mxu0 %v1802
      %v1824 = vpop.f32.mrf.mxu0
      %v1825 = vadd.f32 %v1794, %v1824
      %1826 = vmatmul.f32.gmra.mxu0 %v1805
      %v1827 = vpop.f32.mrf.mxu0
      %v1828 = vadd.f32 %v1799, %v1827
      %1829 = vdwg.mxu0
      %1830 = vmatpush.msra.mxu0 0.0
      %1831 = vmatpush.msra.mxu0 0.0
      %1832 = vmatpush.msra.mxu0 0.0
      %1833 = vmatpush.msra.mxu0 0.0
      %1834 = vmatpush.msra.mxu0 0.0
      %1835 = vmatpush.msra.mxu0 0.0
      %1836 = vmatpush.msra.mxu0 0.0
      %1837 = vmatpush.msra.mxu0 0.0
      %1838 = vmatpush.msra.mxu0 0.0
      %1839 = vmatpush.msra.mxu0 0.0
      %1840 = vmatpush.msra.mxu0 0.0
      %1841 = vmatpush.msra.mxu0 0.0
      %1842 = vmatpush.msra.mxu0 0.0
      %1843 = vmatpush.msra.mxu0 0.0
      %1844 = vmatpush.msra.mxu0 %v1786
      %1845 = vmatpush.msra.mxu0 %v1784
      %1846 = vmatmul.f32.gmra.mxu0 %v1802
      %v1847 = vpop.f32.mrf.mxu0
      %v1848 = vadd.f32 %v1794, %v1847
      %1849 = vmatmul.f32.gmra.mxu0 %v1805
      %v1850 = vpop.f32.mrf.mxu0
      %v1851 = vadd.f32 %v1799, %v1850
      %1852 = vdwg.mxu0
      %v1853 = vadd.f32 %v873, %v1825
      %v1854 = vadd.f32 %v896, %v1848
      %v1855 = vadd.f32 %v876, %v1828
      %v1856 = vadd.f32 %v899, %v1851
      %v1857 = vld [vmem:[%s14] sm:$0xff]
      %v1858 = vld [vmem:[%s14 + $0x8] sm:$0xff]
      %v1859 = vld [vmem:[%s15] sm:$0xff]
      %v1860 = vld [vmem:[%s15 + $0x8] sm:$0xff]
      %v1861 = vadd.f32 %v1853, %v1855
      %v1862 = vrot.slane %v1861, 4
      %v1863 = vadd.f32 %v1861, %v1862
      %v1864 = vrot.slane %v1863, 2
      %v1865 = vadd.f32 %v1863, %v1864
      %v1866 = vrot.slane %v1865, 1
      %v1867 = vadd.f32 %v1865, %v1866
      %v1868 = vadd.f32 %v1854, %v1856
      %v1869 = vrot.slane %v1868, 4
      %v1870 = vadd.f32 %v1868, %v1869
      %v1871 = vrot.slane %v1870, 2
      %v1872 = vadd.f32 %v1870, %v1871
      %v1873 = vrot.slane %v1872, 1
      %v1874 = vadd.f32 %v1872, %v1873
      %v1875 = vmul.f32 %v1867, %v925
      %v1876 = vmul.f32 %v1874, %v925
      %v1877 = vsub.f32 %v1853, %v1875
      %v1878 = vsub.f32 %v1854, %v1876
      %v1879 = vsub.f32 %v1855, %v1875
      %v1880 = vsub.f32 %v1856, %v1876
      %v1881 = vmul.f32 %v1877, %v1877
      %v1882 = vmul.f32 %v1878, %v1878
      %v1883 = vmul.f32 %v1879, %v1879
      %v1884 = vmul.f32 %v1880, %v1880
      %v1885 = vadd.f32 %v1881, %v1883
      %v1886 = vrot.slane %v1885, 4
      %v1887 = vadd.f32 %v1885, %v1886
      %v1888 = vrot.slane %v1887, 2
      %v1889 = vadd.f32 %v1887, %v1888
      %v1890 = vrot.slane %v1889, 1
      %v1891 = vadd.f32 %v1889, %v1890
      %v1892 = vadd.f32 %v1882, %v1884
      %v1893 = vrot.slane %v1892, 4
      %v1894 = vadd.f32 %v1892, %v1893
      %v1895 = vrot.slane %v1894, 2
      %v1896 = vadd.f32 %v1894, %v1895
      %v1897 = vrot.slane %v1896, 1
      %v1898 = vadd.f32 %v1896, %v1897
      %v1899 = vmul.f32 %v1891, %v925
      %v1900 = vmul.f32 %v1898, %v925
      %v1901 = vadd.f32 %v1899, 1e-06
      %v1902 = vadd.f32 %v1900, 1e-06
      %v1903 = vrsqrt.pop %v1901
      %v1904 = vmul.f32 %v1903, %v1901
      %v1905 = vmul.f32 %v1904, %v1903
      %v1906 = vmul.f32 0.5, %v1905
      %v1907 = vsub.f32 1.5, %v1906
      %v1908 = vmul.f32 %v1903, %v1907
      %v1909 = vmul.f32 %v1901, %v1908
      %vm1910 = vcmp.eq.f32.partialorder %v1901, inf
      %v1911 = vsel %vm1910, %v1901, %v1909
      %vm1912 = vcmp.eq.f32.partialorder %v1901, 0.0
      %v1913 = vand.u32 %v1901, 2147483648
      %v1914 = vsel %vm1912, %v1913, %v1911
      %v1915 = vrsqrt.pop %v1902
      %v1916 = vmul.f32 %v1915, %v1902
      %v1917 = vmul.f32 %v1916, %v1915
      %v1918 = vmul.f32 0.5, %v1917
      %v1919 = vsub.f32 1.5, %v1918
      %v1920 = vmul.f32 %v1915, %v1919
      %v1921 = vmul.f32 %v1902, %v1920
      %vm1922 = vcmp.eq.f32.partialorder %v1902, inf
      %v1923 = vsel %vm1922, %v1902, %v1921
      %vm1924 = vcmp.eq.f32.partialorder %v1902, 0.0
      %v1925 = vand.u32 %v1902, 2147483648
      %v1926 = vsel %vm1924, %v1925, %v1923
      %v1927 = vrcp.pop %v1914
      %v1928 = vmul.f32 %v1914, %v1927
      %v1929 = vsub.f32 1.0, %v1928
      %v1930 = vmul.f32 %v1927, %v1929
      %v1931 = vadd.f32 %v1927, %v1930
      %vm1932 = vweird.f32 %v1914
      %vm1933 = vweird.f32 %v1927
      %vm1934 = vmor %vm1932, %vm1933
      %v1935 = vsel %vm1934, %v1927, %v1931
      %v1936 = vand.u32 2147483647, %v1914
      %vm1937 = vcmp.eq.f32.partialorder %v1936, 8.507059e+37
      %v1938 = vand.u32 %v1914, 2147483648
      %v1939 = vor.u32 1.1754944e-38, %v1938
      %v1940 = vsel %vm1937, %v1939, %v1935
      %v1941 = vmul.f32 %v1877, %v1940
      %v1942 = vrcp.pop %v1926
      %v1943 = vmul.f32 %v1926, %v1942
      %v1944 = vsub.f32 1.0, %v1943
      %v1945 = vmul.f32 %v1942, %v1944
      %v1946 = vadd.f32 %v1942, %v1945
      %vm1947 = vweird.f32 %v1926
      %vm1948 = vweird.f32 %v1942
      %vm1949 = vmor %vm1947, %vm1948
      %v1950 = vsel %vm1949, %v1942, %v1946
      %v1951 = vand.u32 2147483647, %v1926
      %vm1952 = vcmp.eq.f32.partialorder %v1951, 8.507059e+37
      %v1953 = vand.u32 %v1926, 2147483648
      %v1954 = vor.u32 1.1754944e-38, %v1953
      %v1955 = vsel %vm1952, %v1954, %v1950
      %v1956 = vmul.f32 %v1878, %v1955
      %v1957 = vmul.f32 %v1879, %v1940
      %v1958 = vmul.f32 %v1880, %v1955
      %1960 = vset.pattern.permute.xlu0 0
      %1961 = vperm.xlu0 %1960, %v1857
      %v1962 = vpop.permute.xlu0 %1961
      %1965 = vset.pattern.permute.xlu0 0
      %1966 = vperm.xlu0 %1965, %v1858
      %v1967 = vpop.permute.xlu0 %1966
      %v1969 = vmul.f32 %v1962, %v1941
      %v1970 = vmul.f32 %v1962, %v1956
      %v1971 = vmul.f32 %v1967, %v1957
      %v1972 = vmul.f32 %v1967, %v1958
      %1974 = vset.pattern.permute.xlu0 0
      %1975 = vperm.xlu0 %1974, %v1859
      %v1976 = vpop.permute.xlu0 %1975
      %1979 = vset.pattern.permute.xlu0 0
      %1980 = vperm.xlu0 %1979, %v1860
      %v1981 = vpop.permute.xlu0 %1980
      %v1983 = vadd.f32 %v1969, %v1976
      %v1984 = vadd.f32 %v1970, %v1976
      %v1985 = vadd.f32 %v1971, %v1981
      %v1986 = vadd.f32 %v1972, %v1981
      %v1987 = vld [vmem:[%s16] sm:$0xff]
      %v1988 = vld [vmem:[%s16 + $0x8] sm:$0xff]
      %v1989 = vld [vmem:[%s17] sm:$0xff]
      %v1990 = vld [vmem:[%s17 + $0x8] sm:$0xff]
      %1992 = vset.pattern.permute.xlu0 0
      %1993 = vperm.xlu0 %1992, %v1989
      %v1994 = vpop.permute.xlu0 %1993
      %1997 = vset.pattern.permute.xlu0 0
      %1998 = vperm.xlu0 %1997, %v1990
      %v1999 = vpop.permute.xlu0 %1998
      %v2002 = vsel %vm1066, %v1987, 0
      %v2005 = vsel %vm1066, %v1988, 0
      %2007 = vmatpush.msra.mxu0 0.0
      %2008 = vmatpush.msra.mxu0 0.0
      %2009 = vmatpush.msra.mxu0 0.0
      %2010 = vmatpush.msra.mxu0 0.0
      %2011 = vmatpush.msra.mxu0 0.0
      %2012 = vmatpush.msra.mxu0 0.0
      %2013 = vmatpush.msra.mxu0 0.0
      %2014 = vmatpush.msra.mxu0 0.0
      %2015 = vmatpush.msra.mxu0 0.0
      %2016 = vmatpush.msra.mxu0 0.0
      %2017 = vmatpush.msra.mxu0 0.0
      %2018 = vmatpush.msra.mxu0 0.0
      %2019 = vmatpush.msra.mxu0 0.0
      %2020 = vmatpush.msra.mxu0 0.0
      %2021 = vmatpush.msra.mxu0 %v1985
      %2022 = vmatpush.msra.mxu0 %v1983
      %2023 = vmatmul.f32.gmra.mxu0 %v2002
      %v2024 = vpop.f32.mrf.mxu0
      %v2025 = vadd.f32 %v1994, %v2024
      %2026 = vmatmul.f32.gmra.mxu0 %v2005
      %v2027 = vpop.f32.mrf.mxu0
      %v2028 = vadd.f32 %v1999, %v2027
      %2029 = vdwg.mxu0
      %2030 = vmatpush.msra.mxu0 0.0
      %2031 = vmatpush.msra.mxu0 0.0
      %2032 = vmatpush.msra.mxu0 0.0
      %2033 = vmatpush.msra.mxu0 0.0
      %2034 = vmatpush.msra.mxu0 0.0
      %2035 = vmatpush.msra.mxu0 0.0
      %2036 = vmatpush.msra.mxu0 0.0
      %2037 = vmatpush.msra.mxu0 0.0
      %2038 = vmatpush.msra.mxu0 0.0
      %2039 = vmatpush.msra.mxu0 0.0
      %2040 = vmatpush.msra.mxu0 0.0
      %2041 = vmatpush.msra.mxu0 0.0
      %2042 = vmatpush.msra.mxu0 0.0
      %2043 = vmatpush.msra.mxu0 0.0
      %2044 = vmatpush.msra.mxu0 %v1986
      %2045 = vmatpush.msra.mxu0 %v1984
      %2046 = vmatmul.f32.gmra.mxu0 %v2002
      %v2047 = vpop.f32.mrf.mxu0
      %v2048 = vadd.f32 %v1994, %v2047
      %2049 = vmatmul.f32.gmra.mxu0 %v2005
      %v2050 = vpop.f32.mrf.mxu0
      %v2051 = vadd.f32 %v1999, %v2050
      %2052 = vdwg.mxu0
      %v2053 = vld [vmem:[%s18] sm:$0xff]
      %v2054 = vld [vmem:[%s18 + $0x8] sm:$0xff]
      %v2055 = vld [vmem:[%s19] sm:$0xff]
      %v2056 = vld [vmem:[%s19 + $0x8] sm:$0xff]
      %2058 = vset.pattern.permute.xlu0 0
      %2059 = vperm.xlu0 %2058, %v2055
      %v2060 = vpop.permute.xlu0 %2059
      %2063 = vset.pattern.permute.xlu0 0
      %2064 = vperm.xlu0 %2063, %v2056
      %v2065 = vpop.permute.xlu0 %2064
      %v2068 = vsel %vm1066, %v2053, 0
      %v2071 = vsel %vm1066, %v2054, 0
      %2073 = vmatpush.msra.mxu0 0.0
      %2074 = vmatpush.msra.mxu0 0.0
      %2075 = vmatpush.msra.mxu0 0.0
      %2076 = vmatpush.msra.mxu0 0.0
      %2077 = vmatpush.msra.mxu0 0.0
      %2078 = vmatpush.msra.mxu0 0.0
      %2079 = vmatpush.msra.mxu0 0.0
      %2080 = vmatpush.msra.mxu0 0.0
      %2081 = vmatpush.msra.mxu0 0.0
      %2082 = vmatpush.msra.mxu0 0.0
      %2083 = vmatpush.msra.mxu0 0.0
      %2084 = vmatpush.msra.mxu0 0.0
      %2085 = vmatpush.msra.mxu0 0.0
      %2086 = vmatpush.msra.mxu0 0.0
      %2087 = vmatpush.msra.mxu0 %v1985
      %2088 = vmatpush.msra.mxu0 %v1983
      %2089 = vmatmul.f32.gmra.mxu0 %v2068
      %v2090 = vpop.f32.mrf.mxu0
      %v2091 = vadd.f32 %v2060, %v2090
      %2092 = vmatmul.f32.gmra.mxu0 %v2071
      %v2093 = vpop.f32.mrf.mxu0
      %v2094 = vadd.f32 %v2065, %v2093
      %2095 = vdwg.mxu0
      %2096 = vmatpush.msra.mxu0 0.0
      %2097 = vmatpush.msra.mxu0 0.0
      %2098 = vmatpush.msra.mxu0 0.0
      %2099 = vmatpush.msra.mxu0 0.0
      %2100 = vmatpush.msra.mxu0 0.0
      %2101 = vmatpush.msra.mxu0 0.0
      %2102 = vmatpush.msra.mxu0 0.0
      %2103 = vmatpush.msra.mxu0 0.0
      %2104 = vmatpush.msra.mxu0 0.0
      %2105 = vmatpush.msra.mxu0 0.0
      %2106 = vmatpush.msra.mxu0 0.0
      %2107 = vmatpush.msra.mxu0 0.0
      %2108 = vmatpush.msra.mxu0 0.0
      %2109 = vmatpush.msra.mxu0 0.0
      %2110 = vmatpush.msra.mxu0 %v1986
      %2111 = vmatpush.msra.mxu0 %v1984
      %2112 = vmatmul.f32.gmra.mxu0 %v2068
      %v2113 = vpop.f32.mrf.mxu0
      %v2114 = vadd.f32 %v2060, %v2113
      %2115 = vmatmul.f32.gmra.mxu0 %v2071
      %v2116 = vpop.f32.mrf.mxu0
      %v2117 = vadd.f32 %v2065, %v2116
      %2118 = vdwg.mxu0
      %v2119 = vmul.f32 %v2025, %v2091
      %v2120 = vmul.f32 %v2048, %v2114
      %v2121 = vmul.f32 %v2028, %v2094
      %v2122 = vmul.f32 %v2051, %v2117
      %v2123 = vld [vmem:[%s20] sm:$0xff]
      %v2124 = vld [vmem:[%s20 + $0x8] sm:$0xff]
      %v2125 = vld [vmem:[%s21] sm:$0xff]
      %v2126 = vld [vmem:[%s21 + $0x8] sm:$0xff]
      %2128 = vset.pattern.permute.xlu0 0
      %2129 = vperm.xlu0 %2128, %v2125
      %v2130 = vpop.permute.xlu0 %2129
      %2133 = vset.pattern.permute.xlu0 0
      %2134 = vperm.xlu0 %2133, %v2126
      %v2135 = vpop.permute.xlu0 %2134
      %v2138 = vsel %vm1066, %v2123, 0
      %v2141 = vsel %vm1066, %v2124, 0
      %2143 = vmatpush.msra.mxu0 0.0
      %2144 = vmatpush.msra.mxu0 0.0
      %2145 = vmatpush.msra.mxu0 0.0
      %2146 = vmatpush.msra.mxu0 0.0
      %2147 = vmatpush.msra.mxu0 0.0
      %2148 = vmatpush.msra.mxu0 0.0
      %2149 = vmatpush.msra.mxu0 0.0
      %2150 = vmatpush.msra.mxu0 0.0
      %2151 = vmatpush.msra.mxu0 0.0
      %2152 = vmatpush.msra.mxu0 0.0
      %2153 = vmatpush.msra.mxu0 0.0
      %2154 = vmatpush.msra.mxu0 0.0
      %2155 = vmatpush.msra.mxu0 0.0
      %2156 = vmatpush.msra.mxu0 0.0
      %2157 = vmatpush.msra.mxu0 %v2121
      %2158 = vmatpush.msra.mxu0 %v2119
      %2159 = vmatmul.f32.gmra.mxu0 %v2138
      %v2160 = vpop.f32.mrf.mxu0
      %v2161 = vadd.f32 %v2130, %v2160
      %2162 = vmatmul.f32.gmra.mxu0 %v2141
      %v2163 = vpop.f32.mrf.mxu0
      %v2164 = vadd.f32 %v2135, %v2163
      %2165 = vdwg.mxu0
      %2166 = vmatpush.msra.mxu0 0.0
      %2167 = vmatpush.msra.mxu0 0.0
      %2168 = vmatpush.msra.mxu0 0.0
      %2169 = vmatpush.msra.mxu0 0.0
      %2170 = vmatpush.msra.mxu0 0.0
      %2171 = vmatpush.msra.mxu0 0.0
      %2172 = vmatpush.msra.mxu0 0.0
      %2173 = vmatpush.msra.mxu0 0.0
      %2174 = vmatpush.msra.mxu0 0.0
      %2175 = vmatpush.msra.mxu0 0.0
      %2176 = vmatpush.msra.mxu0 0.0
      %2177 = vmatpush.msra.mxu0 0.0
      %2178 = vmatpush.msra.mxu0 0.0
      %2179 = vmatpush.msra.mxu0 0.0
      %2180 = vmatpush.msra.mxu0 %v2122
      %2181 = vmatpush.msra.mxu0 %v2120
      %2182 = vmatmul.f32.gmra.mxu0 %v2138
      %v2183 = vpop.f32.mrf.mxu0
      %v2184 = vadd.f32 %v2130, %v2183
      %2185 = vmatmul.f32.gmra.mxu0 %v2141
      %v2186 = vpop.f32.mrf.mxu0
      %v2187 = vadd.f32 %v2135, %v2186
      %2188 = vdwg.mxu0
      %v2189 = vadd.f32 %v1853, %v2161
      %v2190 = vadd.f32 %v1854, %v2184
      %v2191 = vadd.f32 %v1855, %v2164
      %v2192 = vadd.f32 %v1856, %v2187
      %v2193 = vld [vmem:[%s22] sm:$0x77]
      %v2194 = vld [vmem:[%s23] sm:$0x7]
      %2195 = vrot.lane.b32.xlu0 %v2189, 17
      %v2196 = vpop.permute.xlu0 %2195
      %2197 = vrot.lane.b32.xlu0 %v2191, 17
      %v2198 = vpop.permute.xlu0 %2197
      %2199 = vrot.lane.b32.xlu0 %v2190, 17
      %v2200 = vpop.permute.xlu0 %2199
      %2201 = vrot.lane.b32.xlu0 %v2192, 17
      %v2202 = vpop.permute.xlu0 %2201
      %v2203 = vsel %vm754, %v2196, %v2200
      %v2204 = vsel %vm754, %v2198, %v2202
      %v2205 = vsel %vm754, %v2200, %v2196
      %v2206 = vsel %vm754, %v2202, %v2198
      %v2207 = vmul.f32 %v2205, %v757
      %v2208 = vmul.f32 %v2203, %v758
      %v2209 = vmul.f32 %v2206, %v757
      %v2210 = vmul.f32 %v2204, %v758
      %2211 = vrot.lane.b32.xlu0 %v2189, 16
      %v2212 = vpop.permute.xlu0 %2211
      %2213 = vrot.lane.b32.xlu0 %v2191, 16
      %v2214 = vpop.permute.xlu0 %2213
      %2215 = vrot.lane.b32.xlu0 %v2190, 16
      %v2216 = vpop.permute.xlu0 %2215
      %2217 = vrot.lane.b32.xlu0 %v2192, 16
      %v2218 = vpop.permute.xlu0 %2217
      %v2219 = vsel %vm765, %v2212, %v2216
      %v2220 = vsel %vm765, %v2214, %v2218
      %v2221 = vsel %vm765, %v2216, %v2212
      %v2222 = vsel %vm765, %v2218, %v2214
      %v2223 = vmul.f32 %v2221, %v768
      %v2224 = vmul.f32 %v2219, %v769
      %v2225 = vmul.f32 %v2222, %v768
      %v2226 = vmul.f32 %v2220, %v769
      %2227 = vrot.lane.b32.xlu0 %v2189, 15
      %v2228 = vpop.permute.xlu0 %2227
      %2229 = vrot.lane.b32.xlu0 %v2191, 15
      %v2230 = vpop.permute.xlu0 %2229
      %2231 = vrot.lane.b32.xlu0 %v2190, 15
      %v2232 = vpop.permute.xlu0 %2231
      %2233 = vrot.lane.b32.xlu0 %v2192, 15
      %v2234 = vpop.permute.xlu0 %2233
      %v2235 = vsel %vm776, %v2228, %v2232
      %v2236 = vsel %vm776, %v2230, %v2234
      %v2237 = vsel %vm776, %v2232, %v2228
      %v2238 = vsel %vm776, %v2234, %v2230
      %v2239 = vmul.f32 %v2237, %v779
      %v2240 = vmul.f32 %v2235, %v780
      %v2241 = vmul.f32 %v2238, %v779
      %v2242 = vmul.f32 %v2236, %v780
      %2243 = vrot.lane.b32.xlu0 %v2189, 1
      %v2244 = vpop.permute.xlu0 %2243
      %2245 = vrot.lane.b32.xlu0 %v2191, 1
      %v2246 = vpop.permute.xlu0 %2245
      %2247 = vrot.lane.b32.xlu0 %v2190, 1
      %v2248 = vpop.permute.xlu0 %2247
      %2249 = vrot.lane.b32.xlu0 %v2192, 1
      %v2250 = vpop.permute.xlu0 %2249
      %v2251 = vsel %vm787, %v2244, %v2248
      %v2252 = vsel %vm787, %v2246, %v2250
      %v2253 = vsel %vm787, %v2248, %v2244
      %v2254 = vsel %vm787, %v2250, %v2246
      %v2255 = vmul.f32 %v2253, %v790
      %v2256 = vmul.f32 %v2251, %v791
      %v2257 = vmul.f32 %v2254, %v790
      %v2258 = vmul.f32 %v2252, %v791
      %2259 = vrot.lane.b32.xlu0 %v2189, 127
      %v2260 = vpop.permute.xlu0 %2259
      %2261 = vrot.lane.b32.xlu0 %v2191, 127
      %v2262 = vpop.permute.xlu0 %2261
      %2263 = vrot.lane.b32.xlu0 %v2190, 127
      %v2264 = vpop.permute.xlu0 %2263
      %2265 = vrot.lane.b32.xlu0 %v2192, 127
      %v2266 = vpop.permute.xlu0 %2265
      %v2267 = vsel %vm798, %v2260, %v2264
      %v2268 = vsel %vm798, %v2262, %v2266
      %v2269 = vsel %vm798, %v2264, %v2260
      %v2270 = vsel %vm798, %v2266, %v2262
      %v2271 = vmul.f32 %v2267, %v801
      %v2272 = vmul.f32 %v2269, %v802
      %v2273 = vmul.f32 %v2268, %v801
      %v2274 = vmul.f32 %v2270, %v802
      %2275 = vrot.lane.b32.xlu0 %v2189, 113
      %v2276 = vpop.permute.xlu0 %2275
      %2277 = vrot.lane.b32.xlu0 %v2191, 113
      %v2278 = vpop.permute.xlu0 %2277
      %2279 = vrot.lane.b32.xlu0 %v2190, 113
      %v2280 = vpop.permute.xlu0 %2279
      %2281 = vrot.lane.b32.xlu0 %v2192, 113
      %v2282 = vpop.permute.xlu0 %2281
      %v2283 = vsel %vm809, %v2276, %v2280
      %v2284 = vsel %vm809, %v2278, %v2282
      %v2285 = vsel %vm809, %v2280, %v2276
      %v2286 = vsel %vm809, %v2282, %v2278
      %v2287 = vmul.f32 %v2283, %v812
      %v2288 = vmul.f32 %v2285, %v813
      %v2289 = vmul.f32 %v2284, %v812
      %v2290 = vmul.f32 %v2286, %v813
      %2291 = vrot.lane.b32.xlu0 %v2189, 112
      %v2292 = vpop.permute.xlu0 %2291
      %2293 = vrot.lane.b32.xlu0 %v2191, 112
      %v2294 = vpop.permute.xlu0 %2293
      %2295 = vrot.lane.b32.xlu0 %v2190, 112
      %v2296 = vpop.permute.xlu0 %2295
      %2297 = vrot.lane.b32.xlu0 %v2192, 112
      %v2298 = vpop.permute.xlu0 %2297
      %v2299 = vsel %vm820, %v2292, %v2296
      %v2300 = vsel %vm820, %v2294, %v2298
      %v2301 = vsel %vm820, %v2296, %v2292
      %v2302 = vsel %vm820, %v2298, %v2294
      %v2303 = vmul.f32 %v2299, %v823
      %v2304 = vmul.f32 %v2301, %v824
      %v2305 = vmul.f32 %v2300, %v823
      %v2306 = vmul.f32 %v2302, %v824
      %2307 = vrot.lane.b32.xlu0 %v2189, 111
      %v2308 = vpop.permute.xlu0 %2307
      %2309 = vrot.lane.b32.xlu0 %v2191, 111
      %v2310 = vpop.permute.xlu0 %2309
      %2311 = vrot.lane.b32.xlu0 %v2190, 111
      %v2312 = vpop.permute.xlu0 %2311
      %2313 = vrot.lane.b32.xlu0 %v2192, 111
      %v2314 = vpop.permute.xlu0 %2313
      %v2315 = vsel %vm831, %v2308, %v2312
      %v2316 = vsel %vm831, %v2310, %v2314
      %v2317 = vsel %vm831, %v2312, %v2308
      %v2318 = vsel %vm831, %v2314, %v2310
      %v2319 = vmul.f32 %v2315, %v834
      %v2320 = vmul.f32 %v2317, %v835
      %v2321 = vmul.f32 %v2316, %v834
      %v2322 = vmul.f32 %v2318, %v835
      %2324 = vset.pattern.permute.xlu0 0
      %2325 = vperm.xlu0 %2324, %v2194
      %v2326 = vpop.permute.xlu0 %2325
      %2329 = vst [vmem:[#allocation1] ss:$2 sm:$0xff] %v2193
      %v2330 = vld.sshfl [vmem:[#allocation1] sm:$0xff pattern:$0x75316420]
      %v2331 = vld.sshfl [vmem:[#allocation1 + $0x8] sm:$0xff pattern:$0x75316420]
      %v2333 = vsel %vm1066, %v2331, 0
      %2335 = vmatpush.msra.mxu0 %v2305
      %2336 = vmatpush.msra.mxu0 %v2303
      %2337 = vmatpush.msra.mxu0 %v2289
      %2338 = vmatpush.msra.mxu0 %v2287
      %2339 = vmatpush.msra.mxu0 %v2273
      %2340 = vmatpush.msra.mxu0 %v2271
      %2341 = vmatpush.msra.mxu0 %v2191
      %2342 = vmatpush.msra.mxu0 %v2189
      %2343 = vmatpush.msra.mxu0 %v2257
      %2344 = vmatpush.msra.mxu0 %v2255
      %2345 = vmatpush.msra.mxu0 %v2241
      %2346 = vmatpush.msra.mxu0 %v2239
      %2347 = vmatpush.msra.mxu0 %v2225
      %2348 = vmatpush.msra.mxu0 %v2223
      %2349 = vmatpush.msra.mxu0 %v2209
      %2350 = vmatpush.msra.mxu0 %v2207
      %2351 = vmatmul.f32.gmra.mxu0 %v2330
      %v2352 = vpop.f32.mrf.mxu0
      %v2353 = vadd.f32 %v2326, %v2352
      %2354 = vdwg.mxu0
      %2355 = vmatpush.msra.mxu0 0.0
      %2356 = vmatpush.msra.mxu0 0.0
      %2357 = vmatpush.msra.mxu0 0.0
      %2358 = vmatpush.msra.mxu0 0.0
      %2359 = vmatpush.msra.mxu0 0.0
      %2360 = vmatpush.msra.mxu0 0.0
      %2361 = vmatpush.msra.mxu0 0.0
      %2362 = vmatpush.msra.mxu0 0.0
      %2363 = vmatpush.msra.mxu0 0.0
      %2364 = vmatpush.msra.mxu0 0.0
      %2365 = vmatpush.msra.mxu0 0.0
      %2366 = vmatpush.msra.mxu0 0.0
      %2367 = vmatpush.msra.mxu0 0.0
      %2368 = vmatpush.msra.mxu0 0.0
      %2369 = vmatpush.msra.mxu0 %v2321
      %2370 = vmatpush.msra.mxu0 %v2319
      %2371 = vmatmul.f32.gmra.mxu0 %v2333
      %v2372 = vpop.f32.mrf.mxu0
      %v2373 = vadd.f32 %v2353, %v2372
      %2374 = vdwg.mxu0
      %2375 = vmatpush.msra.mxu0 %v2306
      %2376 = vmatpush.msra.mxu0 %v2304
      %2377 = vmatpush.msra.mxu0 %v2290
      %2378 = vmatpush.msra.mxu0 %v2288
      %2379 = vmatpush.msra.mxu0 %v2274
      %2380 = vmatpush.msra.mxu0 %v2272
      %2381 = vmatpush.msra.mxu0 %v2192
      %2382 = vmatpush.msra.mxu0 %v2190
      %2383 = vmatpush.msra.mxu0 %v2258
      %2384 = vmatpush.msra.mxu0 %v2256
      %2385 = vmatpush.msra.mxu0 %v2242
      %2386 = vmatpush.msra.mxu0 %v2240
      %2387 = vmatpush.msra.mxu0 %v2226
      %2388 = vmatpush.msra.mxu0 %v2224
      %2389 = vmatpush.msra.mxu0 %v2210
      %2390 = vmatpush.msra.mxu0 %v2208
      %2391 = vmatmul.f32.gmra.mxu0 %v2330
      %v2392 = vpop.f32.mrf.mxu0
      %v2393 = vadd.f32 %v2326, %v2392
      %2394 = vdwg.mxu0
      %2395 = vmatpush.msra.mxu0 0.0
      %2396 = vmatpush.msra.mxu0 0.0
      %2397 = vmatpush.msra.mxu0 0.0
      %2398 = vmatpush.msra.mxu0 0.0
      %2399 = vmatpush.msra.mxu0 0.0
      %2400 = vmatpush.msra.mxu0 0.0
      %2401 = vmatpush.msra.mxu0 0.0
      %2402 = vmatpush.msra.mxu0 0.0
      %2403 = vmatpush.msra.mxu0 0.0
      %2404 = vmatpush.msra.mxu0 0.0
      %2405 = vmatpush.msra.mxu0 0.0
      %2406 = vmatpush.msra.mxu0 0.0
      %2407 = vmatpush.msra.mxu0 0.0
      %2408 = vmatpush.msra.mxu0 0.0
      %2409 = vmatpush.msra.mxu0 %v2322
      %2410 = vmatpush.msra.mxu0 %v2320
      %2411 = vmatmul.f32.gmra.mxu0 %v2333
      %v2412 = vpop.f32.mrf.mxu0
      %v2413 = vadd.f32 %v2393, %v2412
      %2414 = vdwg.mxu0
      %v2415 = vadd.f32 %v2373, %v742
      %v2416 = vadd.f32 %v2413, %v743
      %v2419 = vrot.slane %v2416, 4
      %vm2420 = vcmask 1043456
      %v2421 = vsel %vm2420, %v2415, %v2419
      %2423 = vst [vmem:[%s737] sm:$0x77] %v2421
      %p2424 = scmp.lt.s32.totalorder %s35, 1
      %s2425 = scalar_select %p2424, %s35, 1
      %s2426 = smul.addr %s2425, 2
      %s2427 = smul.addr %s2426, 4
      %s2428 = scalar_lea.vmem %s24, %s2427
      // Predicated region
      $region117: #{tpu_custom_call.1} parent=115 // pred_check
        %p2429 = pneg %p562
      $region118: #{tpu_custom_call.1} parent=115 // pred_check_branch
        %2431 = sbr.rel (%p2429) target = $region120
      $region119: #{tpu_custom_call.1} parent=115 // pred_region
        _
      $region120: #{tpu_custom_call.1} parent=115 // pred_fallthru
        _
    $region116: #{tpu_custom_call.1} parent=5 // pred_fallthru
      _
    %p2432 = scmp.le.s32.totalorder 2, %s30
    // Predicated region
    $region121: #{tpu_custom_call.1} parent=5 // pred_check
      %p2433 = pneg %p2432
    $region122: #{tpu_custom_call.1} parent=5 // pred_check_branch
      %2435 = sbr.rel (%p2433) target = $region124
    $region123: #{tpu_custom_call.1} parent=5 // pred_region
      %s2436 = ssub.s32 %s30, 2
      // Predicated region
      $region125: #{tpu_custom_call.1} parent=123 // pred_check
        %p2437 = pneg %p568
      $region126: #{tpu_custom_call.1} parent=123 // pred_check_branch
        %2439 = sbr.rel (%p2437) target = $region128
      $region127: #{tpu_custom_call.1} parent=123 // pred_region
        %p2440 = scmp.lt.s32.totalorder %s36, 1
        %s2441 = scalar_select %p2440, %s36, 1
        %s2442 = smul.addr %s2441, 2
        %s2443 = smul.addr %s2442, 4
        %s2444 = scalar_lea.vmem %s24, %s2443
      $region128: #{tpu_custom_call.1} parent=123 // pred_fallthru
        _
    $region124: #{tpu_custom_call.1} parent=5 // pred_fallthru
      _
  $region6: #{tpu_custom_call.1} parent=0 // loop_footer
    %s34 = sadd.s32 1, %s30
  $region7: #{tpu_custom_call.1} parent=0 // loop_footer_branch
    %29 = sbr.rel target = $region3
  $region8: #{tpu_custom_call.1} parent=0 // loop_exit
    _

</llo_original>
